<compile_context>
chip_gen: v7x
topology: tpu7x:2x2x1
jax: 0.10.0
libtpu: 0.0.40
codegen_flags: <defaults>
</compile_context>

<pallas_src>
import functools

import numpy as np
import jax
import jax.numpy as jnp
from jax.experimental import pallas as pl
from jax.experimental.pallas import tpu as pltpu

# ---- model hyperparameters (consistent with the module defaults) ----
B = 2
IN_CH_PROFILE = 6
IN_CH_CAMPAIGN = 7
IN_CH_MEETING = 3
PROFILE_HIST_LEN = 4
T_SEQ = 8                      # campaign/meeting sequence length (equal -> GRU fusion)
OUT_CH_PROFILE = 60
HIDDEN_CAMPAIGN = 10
HIDDEN_MEETING = 5
OUT_CHANNEL = 3
FC1_OUT, FC2_OUT = 256, 64
IN_PROF = IN_CH_PROFILE * PROFILE_HIST_LEN          # 24

# ---- fused / padded kernel layout constants ----
C_FUSED = IN_CH_CAMPAIGN + IN_CH_MEETING            # 10  (fused GRU input width)
C_PAD = 16                                          # padded GRU input channels
H_FUSED = HIDDEN_CAMPAIGN + HIDDEN_MEETING          # 15  (fused hidden: [campaign | meeting])
GP = 128                                            # per-gate lane padding (vreg aligned)

# GRU weight slab (lane width 3*GP = 384), 8-sublane-aligned sections
BGI_ROW = 0                       # (1, 3*GP)   folded b_ih (+ b_hh for r/z gates)
WIH_ROW = 8                       # (C_PAD, 3*GP)
WHH_ROW = 24                      # (GP, 3*GP)  block-diagonal recurrent weight, K padded to 128
GRU_ROWS = WHH_ROW + GP           # 152

# fc / misc slab (lane width GP = 128), 8-sublane-aligned sections
WP_ROW = 0                        # (IN_PROF, GP)  profile Linear weight (in, out), lane-padded
BP_ROW = 24                       # (1, GP)
BHN_ROW = 32                      # (1, GP)        b_hh of the n gate (stays inside r*(.))
BC_ROW = 40                       # (1, GP)        folded fc bias
WCP_ROW = 48                      # (GP, GP)       folded fc weight, profile block
WCG_ROW = WCP_ROW + GP            # (GP, GP)       folded fc weight, fused-GRU block
FC_ROWS = WCG_ROW + GP            # 304


def simplenet_kernel(prof_ref, seq_ref, gruw_ref, fcw_ref, out_ref):
    f32 = jnp.float32

    # static slices of the two weight slabs (8-sublane-aligned sections)
    bgi = gruw_ref[BGI_ROW:BGI_ROW + 1, :]              # (1, 3*GP)
    wih = gruw_ref[WIH_ROW:WIH_ROW + C_PAD, :]          # (16, 3*GP)
    whh = gruw_ref[WHH_ROW:WHH_ROW + GP, :]             # (128, 3*GP)

    wp = fcw_ref[WP_ROW:WP_ROW + IN_PROF, :]            # (24, 128)
    bp = fcw_ref[BP_ROW:BP_ROW + 1, :]                  # (1, 128)
    bhn = fcw_ref[BHN_ROW:BHN_ROW + 1, :]               # (1, 128)
    bc = fcw_ref[BC_ROW:BC_ROW + 1, :]                  # (1, 128)
    wc_p = fcw_ref[WCP_ROW:WCP_ROW + GP, :]             # (128, 128)
    wc_g = fcw_ref[WCG_ROW:WCG_ROW + GP, :]             # (128, 128)

    # ---- profile aggregator: Linear, lane-padded to 128 (pad lanes stay 0) ----
    h_prof = jnp.dot(prof_ref[...], wp, preferred_element_type=f32) + bp   # (B, 128)

    # ---- fused GRU input projection, hoisted: ONE 2D matmul for all steps ----
    gi_all = jnp.dot(seq_ref[...], wih, preferred_element_type=f32) + bgi  # (T*B, 3*GP)

    # ---- fused GRU recurrence (campaign + meeting, block-diagonal W_hh) ----
    # Static unroll: T=8; live state is tiny (h: 1 vreg, gi_all/whh resident).
    # h pad lanes (15:128) stay exactly 0 because all pad columns/rows of
    # wih/whh/bgi/bhn are 0 and the z*h update preserves 0.
    h = jnp.zeros((B, GP), f32)
    for t in range(T_SEQ):
        gi_t = gi_all[t * B:(t + 1) * B, :]                    # (B, 3*GP), off critical path
        gh = jnp.dot(h, whh, preferred_element_type=f32)       # (B, 3*GP), full-128 K, no sub-slice
        # gate slices fall on 128-lane (vreg) boundaries -> free selects
        r = jax.nn.sigmoid(gi_t[:, 0:GP] + gh[:, 0:GP])
        z = jax.nn.sigmoid(gi_t[:, GP:2 * GP] + gh[:, GP:2 * GP])
        n = jnp.tanh(gi_t[:, 2 * GP:3 * GP] + r * (gh[:, 2 * GP:3 * GP] + bhn))
        h = (1.0 - z) * n + z * h

    # ---- relu(concat) + folded fc1@fc2@fc3 as ONE affine layer ----
    hp = jnp.maximum(h_prof, 0.0)                              # (B, 128)
    hg = jnp.maximum(h, 0.0)                                   # (B, 128), [campaign | meeting | 0]
    out_ref[...] = (jnp.dot(hp, wc_p, preferred_element_type=f32)
                    + jnp.dot(hg, wc_g, preferred_element_type=f32)
                    + bc)                                      # lane-dense (B, 128)


def pack_params(p):
    """Host-side (numpy, run ONCE) weight prep: transpose, fuse the two GRUs
    (block-diagonal W_hh), pad gates to 128-lane offsets, fold biases, fold the
    activation-free fc1/fc2/fc3 stack into one affine layer, and pack everything
    into two lane-dense slabs."""
    pn = {k: np.asarray(v, np.float32) for k, v in p.items()}
    hc, hm = HIDDEN_CAMPAIGN, HIDDEN_MEETING

    # ---- GRU slab: [bgi | wih | whh] with lane width 3*GP ----
    gru = np.zeros((GRU_ROWS, 3 * GP), np.float32)
    bhn = np.zeros((1, GP), np.float32)
    for g in range(3):                                  # PyTorch gate order: r, z, n
        col = g * GP
        # input weights (pre-transposed): [campaign rows 0:7 | meeting rows 7:10 | 0-pad]
        gru[WIH_ROW:WIH_ROW + IN_CH_CAMPAIGN, col:col + hc] = \
            pn["wih_c"][g * hc:(g + 1) * hc, :].T
        gru[WIH_ROW + IN_CH_CAMPAIGN:WIH_ROW + C_FUSED, col + hc:col + hc + hm] = \
            pn["wih_m"][g * hm:(g + 1) * hm, :].T
        # recurrent weights, block-diagonal over the fused hidden [campaign | meeting]
        gru[WHH_ROW:WHH_ROW + hc, col:col + hc] = pn["whh_c"][g * hc:(g + 1) * hc, :].T
        gru[WHH_ROW + hc:WHH_ROW + hc + hm, col + hc:col + hc + hm] = \
            pn["whh_m"][g * hm:(g + 1) * hm, :].T
        # biases
        bic = pn["bih_c"][0, g * hc:(g + 1) * hc]
        bim = pn["bih_m"][0, g * hm:(g + 1) * hm]
        if g < 2:   # r, z: b_ih and b_hh always appear summed -> fold host-side
            gru[BGI_ROW, col:col + hc] = bic + pn["bhh_c"][0, g * hc:(g + 1) * hc]
            gru[BGI_ROW, col + hc:col + hc + hm] = bim + pn["bhh_m"][0, g * hm:(g + 1) * hm]
        else:       # n: b_hh_n must stay inside the r*(W_hn h + b_hn) term
            gru[BGI_ROW, col:col + hc] = bic
            gru[BGI_ROW, col + hc:col + hc + hm] = bim
            bhn[0, :hc] = pn["bhh_c"][0, g * hc:(g + 1) * hc]
            bhn[0, hc:hc + hm] = pn["bhh_m"][0, g * hm:(g + 1) * hm]

    # ---- fold fc1 -> fc2 -> fc3 (no nonlinearity between them) ----
    #   out = h @ (W1.T @ W2.T @ W3.T) + (b1 @ W2.T @ W3.T + b2 @ W3.T + b3)
    Wc = pn["w1"].T @ pn["w2"].T @ pn["w3"].T                         # (75, 3)
    bc = pn["b1"] @ pn["w2"].T @ pn["w3"].T + pn["b2"] @ pn["w3"].T + pn["b3"]   # (1, 3)

    # ---- fc / misc slab: lane width GP ----
    fc = np.zeros((FC_ROWS, GP), np.float32)
    fc[WP_ROW:WP_ROW + IN_PROF, :OUT_CH_PROFILE] = pn["wp"].T          # (24, 60) -> lane-padded
    fc[BP_ROW, :OUT_CH_PROFILE] = pn["bp"][0]
    fc[BHN_ROW, :] = bhn[0]
    fc[BC_ROW, :OUT_CHANNEL] = bc[0]
    # folded fc weight, split by concat order [profile(60) | meeting(5) | campaign(10)];
    # the GRU block is remapped to the fused hidden layout [campaign | meeting].
    fc[WCP_ROW:WCP_ROW + OUT_CH_PROFILE, :OUT_CHANNEL] = Wc[:OUT_CH_PROFILE, :]
    fc[WCG_ROW:WCG_ROW + hc, :OUT_CHANNEL] = Wc[OUT_CH_PROFILE + hm:, :]                       # campaign
    fc[WCG_ROW + hc:WCG_ROW + hc + hm, :OUT_CHANNEL] = Wc[OUT_CH_PROFILE:OUT_CH_PROFILE + hm, :]  # meeting

    return jnp.asarray(gru), jnp.asarray(fc)


@jax.jit
def simplenet_forward(x, gru_slab, fc_slab):
    cust_profile, campaign_history, meeting_history = x
    prof = cust_profile.reshape(cust_profile.shape[0], -1).astype(jnp.float32)   # glue: flatten(1)
    # glue: fuse the two GRU input streams along features, pad to C_PAD channels,
    # and lay out time-major so each timestep is a contiguous 2-row block.
    seq = jnp.concatenate([campaign_history, meeting_history], axis=2).astype(jnp.float32)
    seq = jnp.pad(seq, ((0, 0), (0, 0), (0, C_PAD - C_FUSED)))
    seq2d = jnp.transpose(seq, (1, 0, 2)).reshape(T_SEQ * B, C_PAD)

    vmem = pl.BlockSpec(memory_space=pltpu.MemorySpace.VMEM)
    # Single program: B=2 and <0.5 MiB footprint -> no grid needed.
    # (At real batch sizes: add a batch grid + dimension_semantics=("parallel",)
    #  so both v7x TensorCores are used.)
    out_pad = pl.pallas_call(
        simplenet_kernel,
        out_shape=jax.ShapeDtypeStruct((B, GP), jnp.float32),
        in_specs=[vmem] * 4,
        out_specs=vmem,
    )(prof, seq2d, gru_slab, fc_slab)
    return out_pad[:, :OUT_CHANNEL]


# ------------------------- reference (pure JAX) -------------------------

def _gru(seq, w_ih, w_hh, b_ih, b_hh, hidden):
    """PyTorch nn.GRU (1 layer, unidirectional) recurrence. seq: (B, T, C)."""
    b, t_len, _ = seq.shape
    h = jnp.zeros((b, hidden), jnp.float32)
    for t in range(t_len):
        x_t = seq[:, t, :]
        gi = x_t @ w_ih.T + b_ih
        gh = h @ w_hh.T + b_hh
        i_r, i_z, i_n = gi[:, :hidden], gi[:, hidden:2 * hidden], gi[:, 2 * hidden:]
        h_r, h_z, h_n = gh[:, :hidden], gh[:, hidden:2 * hidden], gh[:, 2 * hidden:]
        r = jax.nn.sigmoid(i_r + h_r)
        z = jax.nn.sigmoid(i_z + h_z)
        n = jnp.tanh(i_n + r * h_n)
        h = (1.0 - z) * n + z * h
    return h


def _reference_forward(x, p):
    """Pure-JAX reference matching the PyTorch forward exactly."""
    cust_profile, campaign_history, meeting_history = x
    h_profile = cust_profile.reshape(cust_profile.shape[0], -1) @ p["wp"].T + p["bp"]
    h_campaign = _gru(campaign_history, p["wih_c"], p["whh_c"],
                      p["bih_c"], p["bhh_c"], HIDDEN_CAMPAIGN)
    h_meeting = _gru(meeting_history, p["wih_m"], p["whh_m"],
                     p["bih_m"], p["bhh_m"], HIDDEN_MEETING)
    h = jax.nn.relu(jnp.concatenate([h_profile, h_meeting, h_campaign], axis=1))
    h1 = h @ p["w1"].T + p["b1"]
    h2 = h1 @ p["w2"].T + p["b2"]
    return h2 @ p["w3"].T + p["b3"]


def _make_params(key):
    ks = jax.random.split(key, 16)
    f32 = jnp.float32

    def rnd(k, shape, scale=0.1):
        return (scale * jax.random.normal(k, shape)).astype(f32)

    p = {}
    p["wp"] = rnd(ks[0], (OUT_CH_PROFILE, IN_PROF))
    p["bp"] = rnd(ks[1], (1, OUT_CH_PROFILE))
    # campaign GRU (gate order r, z, n as in PyTorch)
    p["wih_c"] = rnd(ks[2], (3 * HIDDEN_CAMPAIGN, IN_CH_CAMPAIGN))
    p["whh_c"] = rnd(ks[3], (3 * HIDDEN_CAMPAIGN, HIDDEN_CAMPAIGN))
    p["bih_c"] = rnd(ks[4], (1, 3 * HIDDEN_CAMPAIGN))
    p["bhh_c"] = rnd(ks[5], (1, 3 * HIDDEN_CAMPAIGN))
    # meeting GRU
    p["wih_m"] = rnd(ks[6], (3 * HIDDEN_MEETING, IN_CH_MEETING))
    p["whh_m"] = rnd(ks[7], (3 * HIDDEN_MEETING, HIDDEN_MEETING))
    p["bih_m"] = rnd(ks[8], (1, 3 * HIDDEN_MEETING))
    p["bhh_m"] = rnd(ks[9], (1, 3 * HIDDEN_MEETING))
    # fc layers
    p["w1"] = rnd(ks[10], (FC1_OUT, OUT_CH_PROFILE + HIDDEN_MEETING + HIDDEN_CAMPAIGN))
    p["b1"] = rnd(ks[11], (1, FC1_OUT))
    p["w2"] = rnd(ks[12], (FC2_OUT, FC1_OUT))
    p["b2"] = rnd(ks[13], (1, FC2_OUT))
    p["w3"] = rnd(ks[14], (OUT_CHANNEL, FC2_OUT))
    p["b3"] = rnd(ks[15], (1, OUT_CHANNEL))
    return p


if __name__ == "__main__":
    key = jax.random.PRNGKey(0)
    k_prof, k_camp, k_meet, k_params = jax.random.split(key, 4)

    cust_profile = jax.random.normal(
        k_prof, (B, IN_CH_PROFILE, PROFILE_HIST_LEN), jnp.float32)
    campaign_history = jax.random.normal(
        k_camp, (B, T_SEQ, IN_CH_CAMPAIGN), jnp.float32)
    meeting_history = jax.random.normal(
        k_meet, (B, T_SEQ, IN_CH_MEETING), jnp.float32)
    params = _make_params(k_params)

    # Pack weights ONCE (numpy, host-side); reuse the device slabs every call.
    gru_slab, fc_slab = pack_params(params)

    x = (cust_profile, campaign_history, meeting_history)
    out = simplenet_forward(x, gru_slab, fc_slab)
    out = jax.block_until_ready(out)

    ref = _reference_forward(x, params)
    assert out.shape == (B, OUT_CHANNEL)
    assert jnp.allclose(out, ref, atol=1e-4, rtol=1e-4)
    print("KERNEL_OK")
</pallas_src>

<mosaic_0001>
module attributes {stable_mosaic.version = 11 : i64} {
  func.func @simplenet_kernel(%arg0: memref<2x24xf32, #tpu.memory_space<vmem>>, %arg1: memref<16x16xf32, #tpu.memory_space<vmem>>, %arg2: memref<152x384xf32, #tpu.memory_space<vmem>>, %arg3: memref<304x128xf32, #tpu.memory_space<vmem>>, %arg4: memref<2x128xf32, #tpu.memory_space<vmem>>) attributes {dimension_semantics = [], scalar_prefetch = 0 : i64, scratch_operands = 0 : i64, tpu.core_type = #tpu.core_type<tc>} {
    %c0 = arith.constant 0 : index
    %c0_0 = arith.constant 0 : index
    %0 = vector.load %arg2[%c0, %c0_0] : memref<152x384xf32, #tpu.memory_space<vmem>>, vector<1x384xf32>
    %c8 = arith.constant 8 : index
    %c0_1 = arith.constant 0 : index
    %1 = vector.load %arg2[%c8, %c0_1] : memref<152x384xf32, #tpu.memory_space<vmem>>, vector<16x384xf32>
    %c24 = arith.constant 24 : index
    %c0_2 = arith.constant 0 : index
    %2 = vector.load %arg2[%c24, %c0_2] : memref<152x384xf32, #tpu.memory_space<vmem>>, vector<128x384xf32>
    %c0_3 = arith.constant 0 : index
    %c0_4 = arith.constant 0 : index
    %3 = vector.load %arg3[%c0_3, %c0_4] : memref<304x128xf32, #tpu.memory_space<vmem>>, vector<24x128xf32>
    %c24_5 = arith.constant 24 : index
    %c0_6 = arith.constant 0 : index
    %4 = vector.load %arg3[%c24_5, %c0_6] : memref<304x128xf32, #tpu.memory_space<vmem>>, vector<1x128xf32>
    %c32 = arith.constant 32 : index
    %c0_7 = arith.constant 0 : index
    %5 = vector.load %arg3[%c32, %c0_7] : memref<304x128xf32, #tpu.memory_space<vmem>>, vector<1x128xf32>
    %c40 = arith.constant 40 : index
    %c0_8 = arith.constant 0 : index
    %6 = vector.load %arg3[%c40, %c0_8] : memref<304x128xf32, #tpu.memory_space<vmem>>, vector<1x128xf32>
    %c48 = arith.constant 48 : index
    %c0_9 = arith.constant 0 : index
    %7 = vector.load %arg3[%c48, %c0_9] : memref<304x128xf32, #tpu.memory_space<vmem>>, vector<128x128xf32>
    %c176 = arith.constant 176 : index
    %c0_10 = arith.constant 0 : index
    %8 = vector.load %arg3[%c176, %c0_10] : memref<304x128xf32, #tpu.memory_space<vmem>>, vector<128x128xf32>
    %c0_11 = arith.constant 0 : index
    %c0_12 = arith.constant 0 : index
    %9 = vector.load %arg0[%c0_11, %c0_12] : memref<2x24xf32, #tpu.memory_space<vmem>>, vector<2x24xf32>
    %cst = arith.constant dense<0.000000e+00> : vector<2x128xf32>
    %10 = tpu.matmul %9, %3, %cst {dimension_numbers = #tpu.dot_dimension_numbers<[1], [0], [0], [1], [0, 0, 1, 1], [], []>} : vector<2x24xf32>, vector<24x128xf32>, vector<2x128xf32> -> vector<2x128xf32>
    %11 = vector.broadcast %4 : vector<1x128xf32> to vector<2x128xf32>
    %12 = arith.addf %10, %11 : vector<2x128xf32>
    %c0_13 = arith.constant 0 : index
    %c0_14 = arith.constant 0 : index
    %13 = vector.load %arg1[%c0_13, %c0_14] : memref<16x16xf32, #tpu.memory_space<vmem>>, vector<16x16xf32>
    %cst_15 = arith.constant dense<0.000000e+00> : vector<16x384xf32>
    %14 = tpu.matmul %13, %1, %cst_15 {dimension_numbers = #tpu.dot_dimension_numbers<[1], [0], [0], [1], [0, 0, 1, 1], [], []>} : vector<16x16xf32>, vector<16x384xf32>, vector<16x384xf32> -> vector<16x384xf32>
    %15 = vector.broadcast %0 : vector<1x384xf32> to vector<16x384xf32>
    %16 = arith.addf %14, %15 : vector<16x384xf32>
    %cst_16 = arith.constant 0.000000e+00 : f32
    %17 = vector.broadcast %cst_16 : f32 to vector<2x128xf32>
    %18 = vector.extract_strided_slice %16 {offsets = [0, 0], sizes = [2, 384], strides = [1, 1]} : vector<16x384xf32> to vector<2x384xf32>
    %cst_17 = arith.constant dense<0.000000e+00> : vector<2x384xf32>
    %19 = tpu.matmul %17, %2, %cst_17 {dimension_numbers = #tpu.dot_dimension_numbers<[1], [0], [0], [1], [0, 0, 1, 1], [], []>} : vector<2x128xf32>, vector<128x384xf32>, vector<2x384xf32> -> vector<2x384xf32>
    %20 = vector.extract_strided_slice %18 {offsets = [0, 0], sizes = [2, 128], strides = [1, 1]} : vector<2x384xf32> to vector<2x128xf32>
    %21 = vector.extract_strided_slice %19 {offsets = [0, 0], sizes = [2, 128], strides = [1, 1]} : vector<2x384xf32> to vector<2x128xf32>
    %22 = arith.addf %20, %21 : vector<2x128xf32>
    %23 = arith.negf %22 : vector<2x128xf32>
    %24 = math.exp %23 : vector<2x128xf32>
    %cst_18 = arith.constant 1.000000e+00 : f32
    %25 = vector.broadcast %cst_18 : f32 to vector<2x128xf32>
    %26 = arith.addf %25, %24 : vector<2x128xf32>
    %27 = arith.divf %25, %26 : vector<2x128xf32>
    %28 = vector.extract_strided_slice %18 {offsets = [0, 128], sizes = [2, 128], strides = [1, 1]} : vector<2x384xf32> to vector<2x128xf32>
    %29 = vector.extract_strided_slice %19 {offsets = [0, 128], sizes = [2, 128], strides = [1, 1]} : vector<2x384xf32> to vector<2x128xf32>
    %30 = arith.addf %28, %29 : vector<2x128xf32>
    %31 = arith.negf %30 : vector<2x128xf32>
    %32 = math.exp %31 : vector<2x128xf32>
    %cst_19 = arith.constant 1.000000e+00 : f32
    %33 = vector.broadcast %cst_19 : f32 to vector<2x128xf32>
    %34 = arith.addf %33, %32 : vector<2x128xf32>
    %35 = arith.divf %33, %34 : vector<2x128xf32>
    %36 = vector.extract_strided_slice %18 {offsets = [0, 256], sizes = [2, 128], strides = [1, 1]} : vector<2x384xf32> to vector<2x128xf32>
    %37 = vector.extract_strided_slice %19 {offsets = [0, 256], sizes = [2, 128], strides = [1, 1]} : vector<2x384xf32> to vector<2x128xf32>
    %38 = vector.broadcast %5 : vector<1x128xf32> to vector<2x128xf32>
    %39 = arith.addf %37, %38 : vector<2x128xf32>
    %40 = arith.mulf %27, %39 : vector<2x128xf32>
    %41 = arith.addf %36, %40 : vector<2x128xf32>
    %42 = math.tanh %41 : vector<2x128xf32>
    %cst_20 = arith.constant 1.000000e+00 : f32
    %43 = vector.broadcast %cst_20 : f32 to vector<2x128xf32>
    %44 = arith.subf %43, %35 : vector<2x128xf32>
    %45 = arith.mulf %44, %42 : vector<2x128xf32>
    %46 = arith.mulf %35, %17 : vector<2x128xf32>
    %47 = arith.addf %45, %46 : vector<2x128xf32>
    %48 = vector.extract_strided_slice %16 {offsets = [2, 0], sizes = [2, 384], strides = [1, 1]} : vector<16x384xf32> to vector<2x384xf32>
    %cst_21 = arith.constant dense<0.000000e+00> : vector<2x384xf32>
    %49 = tpu.matmul %47, %2, %cst_21 {dimension_numbers = #tpu.dot_dimension_numbers<[1], [0], [0], [1], [0, 0, 1, 1], [], []>} : vector<2x128xf32>, vector<128x384xf32>, vector<2x384xf32> -> vector<2x384xf32>
    %50 = vector.extract_strided_slice %48 {offsets = [0, 0], sizes = [2, 128], strides = [1, 1]} : vector<2x384xf32> to vector<2x128xf32>
    %51 = vector.extract_strided_slice %49 {offsets = [0, 0], sizes = [2, 128], strides = [1, 1]} : vector<2x384xf32> to vector<2x128xf32>
    %52 = arith.addf %50, %51 : vector<2x128xf32>
    %53 = arith.negf %52 : vector<2x128xf32>
    %54 = math.exp %53 : vector<2x128xf32>
    %cst_22 = arith.constant 1.000000e+00 : f32
    %55 = vector.broadcast %cst_22 : f32 to vector<2x128xf32>
    %56 = arith.addf %55, %54 : vector<2x128xf32>
    %57 = arith.divf %55, %56 : vector<2x128xf32>
    %58 = vector.extract_strided_slice %48 {offsets = [0, 128], sizes = [2, 128], strides = [1, 1]} : vector<2x384xf32> to vector<2x128xf32>
    %59 = vector.extract_strided_slice %49 {offsets = [0, 128], sizes = [2, 128], strides = [1, 1]} : vector<2x384xf32> to vector<2x128xf32>
    %60 = arith.addf %58, %59 : vector<2x128xf32>
    %61 = arith.negf %60 : vector<2x128xf32>
    %62 = math.exp %61 : vector<2x128xf32>
    %cst_23 = arith.constant 1.000000e+00 : f32
    %63 = vector.broadcast %cst_23 : f32 to vector<2x128xf32>
    %64 = arith.addf %63, %62 : vector<2x128xf32>
    %65 = arith.divf %63, %64 : vector<2x128xf32>
    %66 = vector.extract_strided_slice %48 {offsets = [0, 256], sizes = [2, 128], strides = [1, 1]} : vector<2x384xf32> to vector<2x128xf32>
    %67 = vector.extract_strided_slice %49 {offsets = [0, 256], sizes = [2, 128], strides = [1, 1]} : vector<2x384xf32> to vector<2x128xf32>
    %68 = vector.broadcast %5 : vector<1x128xf32> to vector<2x128xf32>
    %69 = arith.addf %67, %68 : vector<2x128xf32>
    %70 = arith.mulf %57, %69 : vector<2x128xf32>
    %71 = arith.addf %66, %70 : vector<2x128xf32>
    %72 = math.tanh %71 : vector<2x128xf32>
    %cst_24 = arith.constant 1.000000e+00 : f32
    %73 = vector.broadcast %cst_24 : f32 to vector<2x128xf32>
    %74 = arith.subf %73, %65 : vector<2x128xf32>
    %75 = arith.mulf %74, %72 : vector<2x128xf32>
    %76 = arith.mulf %65, %47 : vector<2x128xf32>
    %77 = arith.addf %75, %76 : vector<2x128xf32>
    %78 = vector.extract_strided_slice %16 {offsets = [4, 0], sizes = [2, 384], strides = [1, 1]} : vector<16x384xf32> to vector<2x384xf32>
    %cst_25 = arith.constant dense<0.000000e+00> : vector<2x384xf32>
    %79 = tpu.matmul %77, %2, %cst_25 {dimension_numbers = #tpu.dot_dimension_numbers<[1], [0], [0], [1], [0, 0, 1, 1], [], []>} : vector<2x128xf32>, vector<128x384xf32>, vector<2x384xf32> -> vector<2x384xf32>
    %80 = vector.extract_strided_slice %78 {offsets = [0, 0], sizes = [2, 128], strides = [1, 1]} : vector<2x384xf32> to vector<2x128xf32>
    %81 = vector.extract_strided_slice %79 {offsets = [0, 0], sizes = [2, 128], strides = [1, 1]} : vector<2x384xf32> to vector<2x128xf32>
    %82 = arith.addf %80, %81 : vector<2x128xf32>
    %83 = arith.negf %82 : vector<2x128xf32>
    %84 = math.exp %83 : vector<2x128xf32>
    %cst_26 = arith.constant 1.000000e+00 : f32
    %85 = vector.broadcast %cst_26 : f32 to vector<2x128xf32>
    %86 = arith.addf %85, %84 : vector<2x128xf32>
    %87 = arith.divf %85, %86 : vector<2x128xf32>
    %88 = vector.extract_strided_slice %78 {offsets = [0, 128], sizes = [2, 128], strides = [1, 1]} : vector<2x384xf32> to vector<2x128xf32>
    %89 = vector.extract_strided_slice %79 {offsets = [0, 128], sizes = [2, 128], strides = [1, 1]} : vector<2x384xf32> to vector<2x128xf32>
    %90 = arith.addf %88, %89 : vector<2x128xf32>
    %91 = arith.negf %90 : vector<2x128xf32>
    %92 = math.exp %91 : vector<2x128xf32>
    %cst_27 = arith.constant 1.000000e+00 : f32
    %93 = vector.broadcast %cst_27 : f32 to vector<2x128xf32>
    %94 = arith.addf %93, %92 : vector<2x128xf32>
    %95 = arith.divf %93, %94 : vector<2x128xf32>
    %96 = vector.extract_strided_slice %78 {offsets = [0, 256], sizes = [2, 128], strides = [1, 1]} : vector<2x384xf32> to vector<2x128xf32>
    %97 = vector.extract_strided_slice %79 {offsets = [0, 256], sizes = [2, 128], strides = [1, 1]} : vector<2x384xf32> to vector<2x128xf32>
    %98 = vector.broadcast %5 : vector<1x128xf32> to vector<2x128xf32>
    %99 = arith.addf %97, %98 : vector<2x128xf32>
    %100 = arith.mulf %87, %99 : vector<2x128xf32>
    %101 = arith.addf %96, %100 : vector<2x128xf32>
    %102 = math.tanh %101 : vector<2x128xf32>
    %cst_28 = arith.constant 1.000000e+00 : f32
    %103 = vector.broadcast %cst_28 : f32 to vector<2x128xf32>
    %104 = arith.subf %103, %95 : vector<2x128xf32>
    %105 = arith.mulf %104, %102 : vector<2x128xf32>
    %106 = arith.mulf %95, %77 : vector<2x128xf32>
    %107 = arith.addf %105, %106 : vector<2x128xf32>
    %108 = vector.extract_strided_slice %16 {offsets = [6, 0], sizes = [2, 384], strides = [1, 1]} : vector<16x384xf32> to vector<2x384xf32>
    %cst_29 = arith.constant dense<0.000000e+00> : vector<2x384xf32>
    %109 = tpu.matmul %107, %2, %cst_29 {dimension_numbers = #tpu.dot_dimension_numbers<[1], [0], [0], [1], [0, 0, 1, 1], [], []>} : vector<2x128xf32>, vector<128x384xf32>, vector<2x384xf32> -> vector<2x384xf32>
    %110 = vector.extract_strided_slice %108 {offsets = [0, 0], sizes = [2, 128], strides = [1, 1]} : vector<2x384xf32> to vector<2x128xf32>
    %111 = vector.extract_strided_slice %109 {offsets = [0, 0], sizes = [2, 128], strides = [1, 1]} : vector<2x384xf32> to vector<2x128xf32>
    %112 = arith.addf %110, %111 : vector<2x128xf32>
    %113 = arith.negf %112 : vector<2x128xf32>
    %114 = math.exp %113 : vector<2x128xf32>
    %cst_30 = arith.constant 1.000000e+00 : f32
    %115 = vector.broadcast %cst_30 : f32 to vector<2x128xf32>
    %116 = arith.addf %115, %114 : vector<2x128xf32>
    %117 = arith.divf %115, %116 : vector<2x128xf32>
    %118 = vector.extract_strided_slice %108 {offsets = [0, 128], sizes = [2, 128], strides = [1, 1]} : vector<2x384xf32> to vector<2x128xf32>
    %119 = vector.extract_strided_slice %109 {offsets = [0, 128], sizes = [2, 128], strides = [1, 1]} : vector<2x384xf32> to vector<2x128xf32>
    %120 = arith.addf %118, %119 : vector<2x128xf32>
    %121 = arith.negf %120 : vector<2x128xf32>
    %122 = math.exp %121 : vector<2x128xf32>
    %cst_31 = arith.constant 1.000000e+00 : f32
    %123 = vector.broadcast %cst_31 : f32 to vector<2x128xf32>
    %124 = arith.addf %123, %122 : vector<2x128xf32>
    %125 = arith.divf %123, %124 : vector<2x128xf32>
    %126 = vector.extract_strided_slice %108 {offsets = [0, 256], sizes = [2, 128], strides = [1, 1]} : vector<2x384xf32> to vector<2x128xf32>
    %127 = vector.extract_strided_slice %109 {offsets = [0, 256], sizes = [2, 128], strides = [1, 1]} : vector<2x384xf32> to vector<2x128xf32>
    %128 = vector.broadcast %5 : vector<1x128xf32> to vector<2x128xf32>
    %129 = arith.addf %127, %128 : vector<2x128xf32>
    %130 = arith.mulf %117, %129 : vector<2x128xf32>
    %131 = arith.addf %126, %130 : vector<2x128xf32>
    %132 = math.tanh %131 : vector<2x128xf32>
    %cst_32 = arith.constant 1.000000e+00 : f32
    %133 = vector.broadcast %cst_32 : f32 to vector<2x128xf32>
    %134 = arith.subf %133, %125 : vector<2x128xf32>
    %135 = arith.mulf %134, %132 : vector<2x128xf32>
    %136 = arith.mulf %125, %107 : vector<2x128xf32>
    %137 = arith.addf %135, %136 : vector<2x128xf32>
    %138 = vector.extract_strided_slice %16 {offsets = [8, 0], sizes = [2, 384], strides = [1, 1]} : vector<16x384xf32> to vector<2x384xf32>
    %cst_33 = arith.constant dense<0.000000e+00> : vector<2x384xf32>
    %139 = tpu.matmul %137, %2, %cst_33 {dimension_numbers = #tpu.dot_dimension_numbers<[1], [0], [0], [1], [0, 0, 1, 1], [], []>} : vector<2x128xf32>, vector<128x384xf32>, vector<2x384xf32> -> vector<2x384xf32>
    %140 = vector.extract_strided_slice %138 {offsets = [0, 0], sizes = [2, 128], strides = [1, 1]} : vector<2x384xf32> to vector<2x128xf32>
    %141 = vector.extract_strided_slice %139 {offsets = [0, 0], sizes = [2, 128], strides = [1, 1]} : vector<2x384xf32> to vector<2x128xf32>
    %142 = arith.addf %140, %141 : vector<2x128xf32>
    %143 = arith.negf %142 : vector<2x128xf32>
    %144 = math.exp %143 : vector<2x128xf32>
    %cst_34 = arith.constant 1.000000e+00 : f32
    %145 = vector.broadcast %cst_34 : f32 to vector<2x128xf32>
    %146 = arith.addf %145, %144 : vector<2x128xf32>
    %147 = arith.divf %145, %146 : vector<2x128xf32>
    %148 = vector.extract_strided_slice %138 {offsets = [0, 128], sizes = [2, 128], strides = [1, 1]} : vector<2x384xf32> to vector<2x128xf32>
    %149 = vector.extract_strided_slice %139 {offsets = [0, 128], sizes = [2, 128], strides = [1, 1]} : vector<2x384xf32> to vector<2x128xf32>
    %150 = arith.addf %148, %149 : vector<2x128xf32>
    %151 = arith.negf %150 : vector<2x128xf32>
    %152 = math.exp %151 : vector<2x128xf32>
    %cst_35 = arith.constant 1.000000e+00 : f32
    %153 = vector.broadcast %cst_35 : f32 to vector<2x128xf32>
    %154 = arith.addf %153, %152 : vector<2x128xf32>
    %155 = arith.divf %153, %154 : vector<2x128xf32>
    %156 = vector.extract_strided_slice %138 {offsets = [0, 256], sizes = [2, 128], strides = [1, 1]} : vector<2x384xf32> to vector<2x128xf32>
    %157 = vector.extract_strided_slice %139 {offsets = [0, 256], sizes = [2, 128], strides = [1, 1]} : vector<2x384xf32> to vector<2x128xf32>
    %158 = vector.broadcast %5 : vector<1x128xf32> to vector<2x128xf32>
    %159 = arith.addf %157, %158 : vector<2x128xf32>
    %160 = arith.mulf %147, %159 : vector<2x128xf32>
    %161 = arith.addf %156, %160 : vector<2x128xf32>
    %162 = math.tanh %161 : vector<2x128xf32>
    %cst_36 = arith.constant 1.000000e+00 : f32
    %163 = vector.broadcast %cst_36 : f32 to vector<2x128xf32>
    %164 = arith.subf %163, %155 : vector<2x128xf32>
    %165 = arith.mulf %164, %162 : vector<2x128xf32>
    %166 = arith.mulf %155, %137 : vector<2x128xf32>
    %167 = arith.addf %165, %166 : vector<2x128xf32>
    %168 = vector.extract_strided_slice %16 {offsets = [10, 0], sizes = [2, 384], strides = [1, 1]} : vector<16x384xf32> to vector<2x384xf32>
    %cst_37 = arith.constant dense<0.000000e+00> : vector<2x384xf32>
    %169 = tpu.matmul %167, %2, %cst_37 {dimension_numbers = #tpu.dot_dimension_numbers<[1], [0], [0], [1], [0, 0, 1, 1], [], []>} : vector<2x128xf32>, vector<128x384xf32>, vector<2x384xf32> -> vector<2x384xf32>
    %170 = vector.extract_strided_slice %168 {offsets = [0, 0], sizes = [2, 128], strides = [1, 1]} : vector<2x384xf32> to vector<2x128xf32>
    %171 = vector.extract_strided_slice %169 {offsets = [0, 0], sizes = [2, 128], strides = [1, 1]} : vector<2x384xf32> to vector<2x128xf32>
    %172 = arith.addf %170, %171 : vector<2x128xf32>
    %173 = arith.negf %172 : vector<2x128xf32>
    %174 = math.exp %173 : vector<2x128xf32>
    %cst_38 = arith.constant 1.000000e+00 : f32
    %175 = vector.broadcast %cst_38 : f32 to vector<2x128xf32>
    %176 = arith.addf %175, %174 : vector<2x128xf32>
    %177 = arith.divf %175, %176 : vector<2x128xf32>
    %178 = vector.extract_strided_slice %168 {offsets = [0, 128], sizes = [2, 128], strides = [1, 1]} : vector<2x384xf32> to vector<2x128xf32>
    %179 = vector.extract_strided_slice %169 {offsets = [0, 128], sizes = [2, 128], strides = [1, 1]} : vector<2x384xf32> to vector<2x128xf32>
    %180 = arith.addf %178, %179 : vector<2x128xf32>
    %181 = arith.negf %180 : vector<2x128xf32>
    %182 = math.exp %181 : vector<2x128xf32>
    %cst_39 = arith.constant 1.000000e+00 : f32
    %183 = vector.broadcast %cst_39 : f32 to vector<2x128xf32>
    %184 = arith.addf %183, %182 : vector<2x128xf32>
    %185 = arith.divf %183, %184 : vector<2x128xf32>
    %186 = vector.extract_strided_slice %168 {offsets = [0, 256], sizes = [2, 128], strides = [1, 1]} : vector<2x384xf32> to vector<2x128xf32>
    %187 = vector.extract_strided_slice %169 {offsets = [0, 256], sizes = [2, 128], strides = [1, 1]} : vector<2x384xf32> to vector<2x128xf32>
    %188 = vector.broadcast %5 : vector<1x128xf32> to vector<2x128xf32>
    %189 = arith.addf %187, %188 : vector<2x128xf32>
    %190 = arith.mulf %177, %189 : vector<2x128xf32>
    %191 = arith.addf %186, %190 : vector<2x128xf32>
    %192 = math.tanh %191 : vector<2x128xf32>
    %cst_40 = arith.constant 1.000000e+00 : f32
    %193 = vector.broadcast %cst_40 : f32 to vector<2x128xf32>
    %194 = arith.subf %193, %185 : vector<2x128xf32>
    %195 = arith.mulf %194, %192 : vector<2x128xf32>
    %196 = arith.mulf %185, %167 : vector<2x128xf32>
    %197 = arith.addf %195, %196 : vector<2x128xf32>
    %198 = vector.extract_strided_slice %16 {offsets = [12, 0], sizes = [2, 384], strides = [1, 1]} : vector<16x384xf32> to vector<2x384xf32>
    %cst_41 = arith.constant dense<0.000000e+00> : vector<2x384xf32>
    %199 = tpu.matmul %197, %2, %cst_41 {dimension_numbers = #tpu.dot_dimension_numbers<[1], [0], [0], [1], [0, 0, 1, 1], [], []>} : vector<2x128xf32>, vector<128x384xf32>, vector<2x384xf32> -> vector<2x384xf32>
    %200 = vector.extract_strided_slice %198 {offsets = [0, 0], sizes = [2, 128], strides = [1, 1]} : vector<2x384xf32> to vector<2x128xf32>
    %201 = vector.extract_strided_slice %199 {offsets = [0, 0], sizes = [2, 128], strides = [1, 1]} : vector<2x384xf32> to vector<2x128xf32>
    %202 = arith.addf %200, %201 : vector<2x128xf32>
    %203 = arith.negf %202 : vector<2x128xf32>
    %204 = math.exp %203 : vector<2x128xf32>
    %cst_42 = arith.constant 1.000000e+00 : f32
    %205 = vector.broadcast %cst_42 : f32 to vector<2x128xf32>
    %206 = arith.addf %205, %204 : vector<2x128xf32>
    %207 = arith.divf %205, %206 : vector<2x128xf32>
    %208 = vector.extract_strided_slice %198 {offsets = [0, 128], sizes = [2, 128], strides = [1, 1]} : vector<2x384xf32> to vector<2x128xf32>
    %209 = vector.extract_strided_slice %199 {offsets = [0, 128], sizes = [2, 128], strides = [1, 1]} : vector<2x384xf32> to vector<2x128xf32>
    %210 = arith.addf %208, %209 : vector<2x128xf32>
    %211 = arith.negf %210 : vector<2x128xf32>
    %212 = math.exp %211 : vector<2x128xf32>
    %cst_43 = arith.constant 1.000000e+00 : f32
    %213 = vector.broadcast %cst_43 : f32 to vector<2x128xf32>
    %214 = arith.addf %213, %212 : vector<2x128xf32>
    %215 = arith.divf %213, %214 : vector<2x128xf32>
    %216 = vector.extract_strided_slice %198 {offsets = [0, 256], sizes = [2, 128], strides = [1, 1]} : vector<2x384xf32> to vector<2x128xf32>
    %217 = vector.extract_strided_slice %199 {offsets = [0, 256], sizes = [2, 128], strides = [1, 1]} : vector<2x384xf32> to vector<2x128xf32>
    %218 = vector.broadcast %5 : vector<1x128xf32> to vector<2x128xf32>
    %219 = arith.addf %217, %218 : vector<2x128xf32>
    %220 = arith.mulf %207, %219 : vector<2x128xf32>
    %221 = arith.addf %216, %220 : vector<2x128xf32>
    %222 = math.tanh %221 : vector<2x128xf32>
    %cst_44 = arith.constant 1.000000e+00 : f32
    %223 = vector.broadcast %cst_44 : f32 to vector<2x128xf32>
    %224 = arith.subf %223, %215 : vector<2x128xf32>
    %225 = arith.mulf %224, %222 : vector<2x128xf32>
    %226 = arith.mulf %215, %197 : vector<2x128xf32>
    %227 = arith.addf %225, %226 : vector<2x128xf32>
    %228 = vector.extract_strided_slice %16 {offsets = [14, 0], sizes = [2, 384], strides = [1, 1]} : vector<16x384xf32> to vector<2x384xf32>
    %cst_45 = arith.constant dense<0.000000e+00> : vector<2x384xf32>
    %229 = tpu.matmul %227, %2, %cst_45 {dimension_numbers = #tpu.dot_dimension_numbers<[1], [0], [0], [1], [0, 0, 1, 1], [], []>} : vector<2x128xf32>, vector<128x384xf32>, vector<2x384xf32> -> vector<2x384xf32>
    %230 = vector.extract_strided_slice %228 {offsets = [0, 0], sizes = [2, 128], strides = [1, 1]} : vector<2x384xf32> to vector<2x128xf32>
    %231 = vector.extract_strided_slice %229 {offsets = [0, 0], sizes = [2, 128], strides = [1, 1]} : vector<2x384xf32> to vector<2x128xf32>
    %232 = arith.addf %230, %231 : vector<2x128xf32>
    %233 = arith.negf %232 : vector<2x128xf32>
    %234 = math.exp %233 : vector<2x128xf32>
    %cst_46 = arith.constant 1.000000e+00 : f32
    %235 = vector.broadcast %cst_46 : f32 to vector<2x128xf32>
    %236 = arith.addf %235, %234 : vector<2x128xf32>
    %237 = arith.divf %235, %236 : vector<2x128xf32>
    %238 = vector.extract_strided_slice %228 {offsets = [0, 128], sizes = [2, 128], strides = [1, 1]} : vector<2x384xf32> to vector<2x128xf32>
    %239 = vector.extract_strided_slice %229 {offsets = [0, 128], sizes = [2, 128], strides = [1, 1]} : vector<2x384xf32> to vector<2x128xf32>
    %240 = arith.addf %238, %239 : vector<2x128xf32>
    %241 = arith.negf %240 : vector<2x128xf32>
    %242 = math.exp %241 : vector<2x128xf32>
    %cst_47 = arith.constant 1.000000e+00 : f32
    %243 = vector.broadcast %cst_47 : f32 to vector<2x128xf32>
    %244 = arith.addf %243, %242 : vector<2x128xf32>
    %245 = arith.divf %243, %244 : vector<2x128xf32>
    %246 = vector.extract_strided_slice %228 {offsets = [0, 256], sizes = [2, 128], strides = [1, 1]} : vector<2x384xf32> to vector<2x128xf32>
    %247 = vector.extract_strided_slice %229 {offsets = [0, 256], sizes = [2, 128], strides = [1, 1]} : vector<2x384xf32> to vector<2x128xf32>
    %248 = vector.broadcast %5 : vector<1x128xf32> to vector<2x128xf32>
    %249 = arith.addf %247, %248 : vector<2x128xf32>
    %250 = arith.mulf %237, %249 : vector<2x128xf32>
    %251 = arith.addf %246, %250 : vector<2x128xf32>
    %252 = math.tanh %251 : vector<2x128xf32>
    %cst_48 = arith.constant 1.000000e+00 : f32
    %253 = vector.broadcast %cst_48 : f32 to vector<2x128xf32>
    %254 = arith.subf %253, %245 : vector<2x128xf32>
    %255 = arith.mulf %254, %252 : vector<2x128xf32>
    %256 = arith.mulf %245, %227 : vector<2x128xf32>
    %257 = arith.addf %255, %256 : vector<2x128xf32>
    %cst_49 = arith.constant 0.000000e+00 : f32
    %258 = vector.broadcast %cst_49 : f32 to vector<2x128xf32>
    %259 = arith.maximumf %12, %258 : vector<2x128xf32>
    %cst_50 = arith.constant 0.000000e+00 : f32
    %260 = vector.broadcast %cst_50 : f32 to vector<2x128xf32>
    %261 = arith.maximumf %257, %260 : vector<2x128xf32>
    %cst_51 = arith.constant dense<0.000000e+00> : vector<2x128xf32>
    %262 = tpu.matmul %259, %7, %cst_51 {dimension_numbers = #tpu.dot_dimension_numbers<[1], [0], [0], [1], [0, 0, 1, 1], [], []>} : vector<2x128xf32>, vector<128x128xf32>, vector<2x128xf32> -> vector<2x128xf32>
    %cst_52 = arith.constant dense<0.000000e+00> : vector<2x128xf32>
    %263 = tpu.matmul %261, %8, %cst_52 {dimension_numbers = #tpu.dot_dimension_numbers<[1], [0], [0], [1], [0, 0, 1, 1], [], []>} : vector<2x128xf32>, vector<128x128xf32>, vector<2x128xf32> -> vector<2x128xf32>
    %264 = arith.addf %262, %263 : vector<2x128xf32>
    %265 = vector.broadcast %6 : vector<1x128xf32> to vector<2x128xf32>
    %266 = arith.addf %264, %265 : vector<2x128xf32>
    %c0_53 = arith.constant 0 : index
    %c0_54 = arith.constant 0 : index
    %267 = vector.load %arg4[%c0_53, %c0_54] : memref<2x128xf32, #tpu.memory_space<vmem>>, vector<2x128xf32>
    tpu.vector_store %arg4[%c0_53, %c0_54], %266 {strides = array<i32>} : memref<2x128xf32, #tpu.memory_space<vmem>>, vector<2x128xf32>,
    return
  }
}

</mosaic_0001>

<llo_original>
// kernel: simplenet_forward.1
$region0: #{simplenet_forward.1}
  #allocation0 [shape = 'u32[]', space=smem, size = 0x4, offset = 0x4, fixed_abs, tag = 'smem constant byte address 0x4 - core index']
  #allocation1 [shape = 'u32[144,128]{1,0:T(1,128)}', space=vmem, size = 0x12000, scoped, tag = 'internal scratch']
  %s0 = inlined_call_operand.vmem [shape: f32[2,24], index: 0, kind: input, shape index: {}]
  %s1 = inlined_call_operand.vmem [shape: f32[16,16], index: 1, kind: input, shape index: {}]
  %s2 = inlined_call_operand.hbm [shape: f32[152,384], index: 2, kind: input, shape index: {}]
  %s3 = inlined_call_operand.hbm [shape: f32[304,128], index: 3, kind: input, shape index: {}]
  %s4 = inlined_call_operand.hbm [shape: f32[2,128], index: 4, kind: output, shape index: {}]
  %s5 = sld [smem:[#allocation0]]
  $region34: #{simplenet_forward.1} parent=0
    _
  %s7 = ssub.s32 1, %s5
  %s8 = scalar_select 0, %s7, %s5
  $region1: #{simplenet_forward.1} parent=0
    #allocation2 [shape = 'u8[233472]{0}', space=vmem, size = 0x39000, scoped, tag = 'input window, operand 2, single buffered']
    #allocation3 [shape = 's32[1]{0}', space=sflag, size = 0x4, scoped, tag = 'scoped memory for simplenet_forward.1']
    #allocation4 [shape = 's32[1]{0}', space=sflag, size = 0x4, scoped, tag = 'scoped memory for simplenet_forward.1']
    #allocation5 [shape = 'u8[155648]{0}', space=vmem, size = 0x26000, scoped, tag = 'input window, operand 3, single buffered']
    #allocation6 [shape = 's32[1]{0}', space=sflag, size = 0x4, scoped, tag = 'scoped memory for simplenet_forward.1']
    #allocation7 [shape = 'u8[1024]{0}', space=vmem, size = 0x400, scoped, tag = 'output window, operand 0, single buffered']
    %9 = vsyncpa [#allocation3], 0
    %10 = vsyncpa [#allocation6], 0
    %11 = vsyncpa [#allocation4], 0
    // Predicated region
    $region2: #{simplenet_forward.1} parent=1 // pred_check
      _
    $region3: #{simplenet_forward.1} parent=1 // pred_check_branch
      %13 = sbr.rel (0) target = $region5
    $region4: #{simplenet_forward.1} parent=1 // pred_region
      _
    $region5: #{simplenet_forward.1} parent=1 // pred_fallthru
      _
    // Predicated region
    $region6: #{simplenet_forward.1} parent=1 // pred_check
      _
    $region7: #{simplenet_forward.1} parent=1 // pred_check_branch
      %15 = sbr.rel (0) target = $region9
    $region8: #{simplenet_forward.1} parent=1 // pred_region
      _
    $region9: #{simplenet_forward.1} parent=1 // pred_fallthru
      _
    // Predicated region
    $region10: #{simplenet_forward.1} parent=1 // pred_check
      _
    $region11: #{simplenet_forward.1} parent=1 // pred_check_branch
      %17 = sbr.rel (0) target = $region13
    $region12: #{simplenet_forward.1} parent=1 // pred_region
      %s19 = ssub.s32 7296, 7296
      %20 = vsyncadd [#allocation3], %s19
      %s21 = sshll.u32 [#allocation2], 4
      %s22 = int_to_ptr.vmem [resolvable:$true] %s21
      %27 = dma.hbm_to_vmem [thread:$0]  %s2, 7296, %s22, [#allocation3], 384, 384, 24
    $region13: #{simplenet_forward.1} parent=1 // pred_fallthru
      _
    // Predicated region
    $region14: #{simplenet_forward.1} parent=1 // pred_check
      _
    $region15: #{simplenet_forward.1} parent=1 // pred_check_branch
      %29 = sbr.rel (0) target = $region17
    $region16: #{simplenet_forward.1} parent=1 // pred_region
      %s31 = ssub.s32 4864, 4864
      %32 = vsyncadd [#allocation6], %s31
      %s33 = sshll.u32 [#allocation5], 4
      %s34 = int_to_ptr.vmem [resolvable:$true] %s33
      %39 = dma.hbm_to_vmem [thread:$0]  %s3, 4864, %s34, [#allocation6], 128, 128, 8
    $region17: #{simplenet_forward.1} parent=1 // pred_fallthru
      _
    // Predicated region
    $region18: #{simplenet_forward.1} parent=1 // pred_check
      _
    $region19: #{simplenet_forward.1} parent=1 // pred_check_branch
      %41 = sbr.rel (0) target = $region21
    $region20: #{simplenet_forward.1} parent=1 // pred_region
      %42 = dma.done [#allocation3], 7296
    $region21: #{simplenet_forward.1} parent=1 // pred_fallthru
      _
    // Predicated region
    $region22: #{simplenet_forward.1} parent=1 // pred_check
      _
    $region23: #{simplenet_forward.1} parent=1 // pred_check_branch
      %44 = sbr.rel (0) target = $region25
    $region24: #{simplenet_forward.1} parent=1 // pred_region
      %45 = dma.done [#allocation6], 4864
    $region25: #{simplenet_forward.1} parent=1 // pred_fallthru
      _
    %v46 = vld [vmem:[#allocation2] ss:$8 sm:$0x7]
    %v47 = vld [vmem:[#allocation2 + $0x18] sm:$0xff]
    %v48 = vld [vmem:[#allocation2 + $0x20] sm:$0xff]
    %v49 = vld [vmem:[#allocation2 + $0x28] sm:$0xff]
    %v50 = vld [vmem:[#allocation2 + $0x30] sm:$0xff]
    %v51 = vld [vmem:[#allocation2 + $0x38] sm:$0xff]
    %v52 = vld [vmem:[#allocation2 + $0x40] sm:$0xff]
    %v53 = vld [vmem:[#allocation2 + $0x48] sm:$0xff]
    %v54 = vld [vmem:[#allocation2 + $0x50] sm:$0xff]
    %v55 = vld [vmem:[#allocation2 + $0x58] sm:$0xff]
    %v56 = vld [vmem:[#allocation2 + $0x60] sm:$0xff]
    %v57 = vld [vmem:[#allocation2 + $0x68] sm:$0xff]
    %v58 = vld [vmem:[#allocation2 + $0x70] sm:$0xff]
    %v59 = vld [vmem:[#allocation2 + $0x78] sm:$0xff]
    %v60 = vld [vmem:[#allocation2 + $0x80] sm:$0xff]
    %v61 = vld [vmem:[#allocation2 + $0x88] sm:$0xff]
    %v62 = vld [vmem:[#allocation2 + $0x90] sm:$0xff]
    %v63 = vld [vmem:[#allocation2 + $0x98] sm:$0xff]
    %v64 = vld [vmem:[#allocation2 + $0xa0] sm:$0xff]
    %v65 = vld [vmem:[#allocation2 + $0xa8] sm:$0xff]
    %v66 = vld [vmem:[#allocation2 + $0xb0] sm:$0xff]
    %v67 = vld [vmem:[#allocation2 + $0xb8] sm:$0xff]
    %v68 = vld [vmem:[#allocation2 + $0xc0] sm:$0xff]
    %v69 = vld [vmem:[#allocation2 + $0xc8] sm:$0xff]
    %v70 = vld [vmem:[#allocation2 + $0xd0] sm:$0xff]
    %v71 = vld [vmem:[#allocation2 + $0xd8] sm:$0xff]
    %v72 = vld [vmem:[#allocation2 + $0xe0] sm:$0xff]
    %v73 = vld [vmem:[#allocation2 + $0xe8] sm:$0xff]
    %v74 = vld [vmem:[#allocation2 + $0xf0] sm:$0xff]
    %v75 = vld [vmem:[#allocation2 + $0xf8] sm:$0xff]
    %v76 = vld [vmem:[#allocation2 + $0x100] sm:$0xff]
    %v77 = vld [vmem:[#allocation2 + $0x108] sm:$0xff]
    %v78 = vld [vmem:[#allocation2 + $0x110] sm:$0xff]
    %v79 = vld [vmem:[#allocation2 + $0x118] sm:$0xff]
    %v80 = vld [vmem:[#allocation2 + $0x120] sm:$0xff]
    %v81 = vld [vmem:[#allocation2 + $0x128] sm:$0xff]
    %v82 = vld [vmem:[#allocation2 + $0x130] sm:$0xff]
    %v83 = vld [vmem:[#allocation2 + $0x138] sm:$0xff]
    %v84 = vld [vmem:[#allocation2 + $0x140] sm:$0xff]
    %v85 = vld [vmem:[#allocation2 + $0x148] sm:$0xff]
    %v86 = vld [vmem:[#allocation2 + $0x150] sm:$0xff]
    %v87 = vld [vmem:[#allocation2 + $0x158] sm:$0xff]
    %v88 = vld [vmem:[#allocation2 + $0x160] sm:$0xff]
    %v89 = vld [vmem:[#allocation2 + $0x168] sm:$0xff]
    %v90 = vld [vmem:[#allocation2 + $0x170] sm:$0xff]
    %v91 = vld [vmem:[#allocation2 + $0x178] sm:$0xff]
    %v92 = vld [vmem:[#allocation2 + $0x180] sm:$0xff]
    %v93 = vld [vmem:[#allocation2 + $0x188] sm:$0xff]
    %v94 = vld [vmem:[#allocation2 + $0x190] sm:$0xff]
    %v95 = vld [vmem:[#allocation2 + $0x198] sm:$0xff]
    %v96 = vld [vmem:[#allocation2 + $0x1a0] sm:$0xff]
    %v97 = vld [vmem:[#allocation2 + $0x1a8] sm:$0xff]
    %v98 = vld [vmem:[#allocation2 + $0x1b0] sm:$0xff]
    %v99 = vld [vmem:[#allocation2 + $0x1b8] sm:$0xff]
    %v100 = vld [vmem:[#allocation2 + $0x1c0] sm:$0xff]
    %v101 = vld [vmem:[#allocation5] sm:$0xff]
    %v102 = vld [vmem:[#allocation5 + $0x8] sm:$0xff]
    %v103 = vld [vmem:[#allocation5 + $0x10] sm:$0xff]
    %v104 = vld [vmem:[#allocation5 + $0x18] sm:$0x1]
    %v105 = vld [vmem:[#allocation5 + $0x20] sm:$0x1]
    %v106 = vld [vmem:[#allocation5 + $0x28] sm:$0x1]
    %v107 = vld [vmem:[#allocation5 + $0x30] sm:$0xff]
    %v108 = vld [vmem:[#allocation5 + $0x38] sm:$0xff]
    %v109 = vld [vmem:[#allocation5 + $0x40] sm:$0xff]
    %v110 = vld [vmem:[#allocation5 + $0x48] sm:$0xff]
    %v111 = vld [vmem:[#allocation5 + $0x50] sm:$0xff]
    %v112 = vld [vmem:[#allocation5 + $0x58] sm:$0xff]
    %v113 = vld [vmem:[#allocation5 + $0x60] sm:$0xff]
    %v114 = vld [vmem:[#allocation5 + $0x68] sm:$0xff]
    %v115 = vld [vmem:[#allocation5 + $0x70] sm:$0xff]
    %v116 = vld [vmem:[#allocation5 + $0x78] sm:$0xff]
    %v117 = vld [vmem:[#allocation5 + $0x80] sm:$0xff]
    %v118 = vld [vmem:[#allocation5 + $0x88] sm:$0xff]
    %v119 = vld [vmem:[#allocation5 + $0x90] sm:$0xff]
    %v120 = vld [vmem:[#allocation5 + $0x98] sm:$0xff]
    %v121 = vld [vmem:[#allocation5 + $0xa0] sm:$0xff]
    %v122 = vld [vmem:[#allocation5 + $0xa8] sm:$0xff]
    %v123 = vld [vmem:[#allocation5 + $0xb0] sm:$0xff]
    %v124 = vld [vmem:[#allocation5 + $0xb8] sm:$0xff]
    %v125 = vld [vmem:[#allocation5 + $0xc0] sm:$0xff]
    %v126 = vld [vmem:[#allocation5 + $0xc8] sm:$0xff]
    %v127 = vld [vmem:[#allocation5 + $0xd0] sm:$0xff]
    %v128 = vld [vmem:[#allocation5 + $0xd8] sm:$0xff]
    %v129 = vld [vmem:[#allocation5 + $0xe0] sm:$0xff]
    %v130 = vld [vmem:[#allocation5 + $0xe8] sm:$0xff]
    %v131 = vld [vmem:[#allocation5 + $0xf0] sm:$0xff]
    %v132 = vld [vmem:[#allocation5 + $0xf8] sm:$0xff]
    %v133 = vld [vmem:[#allocation5 + $0x100] sm:$0xff]
    %v134 = vld [vmem:[#allocation5 + $0x108] sm:$0xff]
    %v135 = vld [vmem:[#allocation5 + $0x110] sm:$0xff]
    %v136 = vld [vmem:[#allocation5 + $0x118] sm:$0xff]
    %v137 = vld [vmem:[#allocation5 + $0x120] sm:$0xff]
    %v138 = vld [vmem:[#allocation5 + $0x128] sm:$0xff]
    %v139 = vld [vmem:[%s0] sm:$0x3]
    %v140 = vlaneseq
    %v141 = vshrl.u32 %v140, 7
    %v142 = vsub.s32 0, %v141
    %v143 = vrot.slane %v104, %v142
    %vm144 = vcmask 195584
    %v146 = vsel %vm144, %v139, 0
    %148 = vmatprep.subr.mxu0 0.0
    %149 = vmatpush1.msra.mxu0 %v101
    %150 = vmatprep.subr.mxu0 0.0
    %151 = vmatpush1.msra.mxu0 %v102
    %152 = vmatprep.subr.mxu0 0.0
    %153 = vmatpush1.msra.mxu0 %v103
    %154 = vmatprep.subr.mxu0 0.0
    %155 = vmatpush1.msra.mxu0 0.0
    %156 = vmatprep.subr.mxu0 0.0
    %157 = vmatpush1.msra.mxu0 0.0
    %158 = vmatprep.subr.mxu0 0.0
    %159 = vmatpush1.msra.mxu0 0.0
    %160 = vmatprep.subr.mxu0 0.0
    %161 = vmatpush1.msra.mxu0 0.0
    %162 = vmatprep.subr.mxu0 0.0
    %163 = vmatpush1.msra.mxu0 0.0
    %164 = vmatprep.subr.mxu0 0.0
    %165 = vmatpush1.msra.mxu0 0.0
    %166 = vmatprep.subr.mxu0 0.0
    %167 = vmatpush1.msra.mxu0 0.0
    %168 = vmatprep.subr.mxu0 0.0
    %169 = vmatpush1.msra.mxu0 0.0
    %170 = vmatprep.subr.mxu0 0.0
    %171 = vmatpush1.msra.mxu0 0.0
    %172 = vmatprep.subr.mxu0 0.0
    %173 = vmatpush1.msra.mxu0 0.0
    %174 = vmatprep.subr.mxu0 0.0
    %175 = vmatpush1.msra.mxu0 0.0
    %176 = vmatprep.subr.mxu0 0.0
    %177 = vmatpush1.msra.mxu0 0.0
    %178 = vmatprep.subr.mxu0 0.0
    %179 = vmatpush1.msra.mxu0 0.0
    %180 = vmatprep.subr.mxu0 0.0
    %181 = vmatpush1.msra.mxu0 0.0
    %182 = vmatprep.subr.mxu0 0.0
    %183 = vmatpush1.msra.mxu0 0.0
    %184 = vmatprep.subr.mxu0 0.0
    %185 = vmatpush1.msra.mxu0 0.0
    %186 = vmatprep.subr.mxu0 0.0
    %187 = vmatpush1.msra.mxu0 0.0
    %188 = vmatprep.subr.mxu0 0.0
    %189 = vmatpush1.msra.mxu0 0.0
    %190 = vmatprep.subr.mxu0 0.0
    %191 = vmatpush1.msra.mxu0 0.0
    %192 = vmatprep.subr.mxu0 0.0
    %193 = vmatpush1.msra.mxu0 0.0
    %194 = vmatprep.subr.mxu0 0.0
    %195 = vmatpush1.msra.mxu0 0.0
    %196 = vmatprep.subr.mxu0 0.0
    %197 = vmatpush1.msra.mxu0 0.0
    %198 = vmatprep.subr.mxu0 0.0
    %199 = vmatpush1.msra.mxu0 0.0
    %200 = vmatprep.subr.mxu0 0.0
    %201 = vmatpush1.msra.mxu0 0.0
    %202 = vmatprep.subr.mxu0 0.0
    %203 = vmatpush1.msra.mxu0 0.0
    %204 = vmatprep.subr.mxu0 0.0
    %205 = vmatpush1.msra.mxu0 0.0
    %206 = vmatprep.subr.mxu0 0.0
    %207 = vmatpush1.msra.mxu0 0.0
    %208 = vmatprep.subr.mxu0 0.0
    %209 = vmatpush1.msra.mxu0 0.0
    %210 = vmatprep.subr.mxu0 0.0
    %211 = vmatpush1.msra.mxu0 0.0
    %212 = vmatprep.mubr.f32.mxu0 0.0
    %213 = vmatmul.mubr.f32.gmra.mrb[0].mxu0 %v146
    %v214 = vpop.f32.mrb[0].mxu0
    %v215 = vadd.f32 %v143, %v214
    %v216 = vpop.f32.mrb[0].mxu0
    %217 = vdwg.mxu0
    %v218 = vld [vmem:[%s1] sm:$0xff]
    %v219 = vld [vmem:[%s1 + $0x8] sm:$0xff]
    %v221 = vlaneseq
    %v222 = vshrl.u32 %v221, 7
    %v223 = vsub.s32 0, %v222
    %v224 = vrot.slane %v46, %v223
    %v225 = vlaneseq
    %v226 = vshrl.u32 %v225, 7
    %v227 = vsub.s32 1, %v226
    %v228 = vrot.slane %v46, %v227
    %v229 = vlaneseq
    %v230 = vshrl.u32 %v229, 7
    %v231 = vsub.s32 2, %v230
    %v232 = vrot.slane %v46, %v231
    %vm236 = vcmask 130048
    %v238 = vsel %vm236, %v218, 0
    %v241 = vsel %vm236, %v219, 0
    %243 = vmatprep.subr.mxu0 %v48
    %244 = vmatpush1.msra.mxu0 %v47
    %245 = vmatprep.subr.mxu0 %v51
    %246 = vmatpush1.msra.mxu0 %v50
    %247 = vmatprep.subr.mxu0 0.0
    %248 = vmatpush1.msra.mxu0 0.0
    %249 = vmatprep.subr.mxu0 0.0
    %250 = vmatpush1.msra.mxu0 0.0
    %251 = vmatprep.subr.mxu0 0.0
    %252 = vmatpush1.msra.mxu0 0.0
    %253 = vmatprep.subr.mxu0 0.0
    %254 = vmatpush1.msra.mxu0 0.0
    %255 = vmatprep.subr.mxu0 0.0
    %256 = vmatpush1.msra.mxu0 0.0
    %257 = vmatprep.subr.mxu0 0.0
    %258 = vmatpush1.msra.mxu0 0.0
    %259 = vmatprep.subr.mxu0 0.0
    %260 = vmatpush1.msra.mxu0 0.0
    %261 = vmatprep.subr.mxu0 0.0
    %262 = vmatpush1.msra.mxu0 0.0
    %263 = vmatprep.subr.mxu0 0.0
    %264 = vmatpush1.msra.mxu0 0.0
    %265 = vmatprep.subr.mxu0 0.0
    %266 = vmatpush1.msra.mxu0 0.0
    %267 = vmatprep.subr.mxu0 0.0
    %268 = vmatpush1.msra.mxu0 0.0
    %269 = vmatprep.subr.mxu0 0.0
    %270 = vmatpush1.msra.mxu0 0.0
    %271 = vmatprep.subr.mxu0 0.0
    %272 = vmatpush1.msra.mxu0 0.0
    %273 = vmatprep.subr.mxu0 0.0
    %274 = vmatpush1.msra.mxu0 0.0
    %275 = vmatprep.subr.mxu0 0.0
    %276 = vmatpush1.msra.mxu0 0.0
    %277 = vmatprep.subr.mxu0 0.0
    %278 = vmatpush1.msra.mxu0 0.0
    %279 = vmatprep.subr.mxu0 0.0
    %280 = vmatpush1.msra.mxu0 0.0
    %281 = vmatprep.subr.mxu0 0.0
    %282 = vmatpush1.msra.mxu0 0.0
    %283 = vmatprep.subr.mxu0 0.0
    %284 = vmatpush1.msra.mxu0 0.0
    %285 = vmatprep.subr.mxu0 0.0
    %286 = vmatpush1.msra.mxu0 0.0
    %287 = vmatprep.subr.mxu0 0.0
    %288 = vmatpush1.msra.mxu0 0.0
    %289 = vmatprep.subr.mxu0 0.0
    %290 = vmatpush1.msra.mxu0 0.0
    %291 = vmatprep.subr.mxu0 0.0
    %292 = vmatpush1.msra.mxu0 0.0
    %293 = vmatprep.subr.mxu0 0.0
    %294 = vmatpush1.msra.mxu0 0.0
    %295 = vmatprep.subr.mxu0 0.0
    %296 = vmatpush1.msra.mxu0 0.0
    %297 = vmatprep.subr.mxu0 0.0
    %298 = vmatpush1.msra.mxu0 0.0
    %299 = vmatprep.subr.mxu0 0.0
    %300 = vmatpush1.msra.mxu0 0.0
    %301 = vmatprep.subr.mxu0 0.0
    %302 = vmatpush1.msra.mxu0 0.0
    %303 = vmatprep.subr.mxu0 0.0
    %304 = vmatpush1.msra.mxu0 0.0
    %305 = vmatprep.subr.mxu0 0.0
    %306 = vmatpush1.msra.mxu0 0.0
    %307 = vmatprep.mubr.f32.mxu0 0.0
    %308 = vmatmul.mubr.f32.gmra.mrb[0].mxu0 %v238
    %v309 = vpop.f32.mrb[0].mxu0
    %v310 = vadd.f32 %v224, %v309
    %v311 = vpop.f32.mrb[0].mxu0
    %v312 = vadd.f32 %v228, %v311
    %313 = vmatprep.mubr.f32.mxu0 0.0
    %314 = vmatmul.mubr.f32.gmra.mrb[0].mxu0 %v241
    %v315 = vpop.f32.mrb[0].mxu0
    %v316 = vadd.f32 %v224, %v315
    %v317 = vpop.f32.mrb[0].mxu0
    %v318 = vadd.f32 %v228, %v317
    %319 = vdwg.mxu0
    %320 = vmatprep.subr.mxu0 0.0
    %321 = vmatpush1.msra.mxu0 %v49
    %322 = vmatprep.subr.mxu0 0.0
    %323 = vmatpush1.msra.mxu0 %v52
    %324 = vmatprep.subr.mxu0 0.0
    %325 = vmatpush1.msra.mxu0 0.0
    %326 = vmatprep.subr.mxu0 0.0
    %327 = vmatpush1.msra.mxu0 0.0
    %328 = vmatprep.subr.mxu0 0.0
    %329 = vmatpush1.msra.mxu0 0.0
    %330 = vmatprep.subr.mxu0 0.0
    %331 = vmatpush1.msra.mxu0 0.0
    %332 = vmatprep.subr.mxu0 0.0
    %333 = vmatpush1.msra.mxu0 0.0
    %334 = vmatprep.subr.mxu0 0.0
    %335 = vmatpush1.msra.mxu0 0.0
    %336 = vmatprep.subr.mxu0 0.0
    %337 = vmatpush1.msra.mxu0 0.0
    %338 = vmatprep.subr.mxu0 0.0
    %339 = vmatpush1.msra.mxu0 0.0
    %340 = vmatprep.subr.mxu0 0.0
    %341 = vmatpush1.msra.mxu0 0.0
    %342 = vmatprep.subr.mxu0 0.0
    %343 = vmatpush1.msra.mxu0 0.0
    %344 = vmatprep.subr.mxu0 0.0
    %345 = vmatpush1.msra.mxu0 0.0
    %346 = vmatprep.subr.mxu0 0.0
    %347 = vmatpush1.msra.mxu0 0.0
    %348 = vmatprep.subr.mxu0 0.0
    %349 = vmatpush1.msra.mxu0 0.0
    %350 = vmatprep.subr.mxu0 0.0
    %351 = vmatpush1.msra.mxu0 0.0
    %352 = vmatprep.subr.mxu0 0.0
    %353 = vmatpush1.msra.mxu0 0.0
    %354 = vmatprep.subr.mxu0 0.0
    %355 = vmatpush1.msra.mxu0 0.0
    %356 = vmatprep.subr.mxu0 0.0
    %357 = vmatpush1.msra.mxu0 0.0
    %358 = vmatprep.subr.mxu0 0.0
    %359 = vmatpush1.msra.mxu0 0.0
    %360 = vmatprep.subr.mxu0 0.0
    %361 = vmatpush1.msra.mxu0 0.0
    %362 = vmatprep.subr.mxu0 0.0
    %363 = vmatpush1.msra.mxu0 0.0
    %364 = vmatprep.subr.mxu0 0.0
    %365 = vmatpush1.msra.mxu0 0.0
    %366 = vmatprep.subr.mxu0 0.0
    %367 = vmatpush1.msra.mxu0 0.0
    %368 = vmatprep.subr.mxu0 0.0
    %369 = vmatpush1.msra.mxu0 0.0
    %370 = vmatprep.subr.mxu0 0.0
    %371 = vmatpush1.msra.mxu0 0.0
    %372 = vmatprep.subr.mxu0 0.0
    %373 = vmatpush1.msra.mxu0 0.0
    %374 = vmatprep.subr.mxu0 0.0
    %375 = vmatpush1.msra.mxu0 0.0
    %376 = vmatprep.subr.mxu0 0.0
    %377 = vmatpush1.msra.mxu0 0.0
    %378 = vmatprep.subr.mxu0 0.0
    %379 = vmatpush1.msra.mxu0 0.0
    %380 = vmatprep.subr.mxu0 0.0
    %381 = vmatpush1.msra.mxu0 0.0
    %382 = vmatprep.subr.mxu0 0.0
    %383 = vmatpush1.msra.mxu0 0.0
    %384 = vmatprep.mubr.f32.mxu0 0.0
    %385 = vmatmul.mubr.f32.gmra.mrb[0].mxu0 %v238
    %v386 = vpop.f32.mrb[0].mxu0
    %v387 = vadd.f32 %v232, %v386
    %v388 = vpop.f32.mrb[0].mxu0
    %389 = vmatprep.mubr.f32.mxu0 0.0
    %390 = vmatmul.mubr.f32.gmra.mrb[0].mxu0 %v241
    %v391 = vpop.f32.mrb[0].mxu0
    %v392 = vadd.f32 %v232, %v391
    %v393 = vpop.f32.mrb[0].mxu0
    %394 = vdwg.mxu0
    %395 = vmatprep.subr.mxu0 %v54
    %396 = vmatpush1.msra.mxu0 %v53
    %397 = vmatprep.subr.mxu0 %v57
    %398 = vmatpush1.msra.mxu0 %v56
    %399 = vmatprep.subr.mxu0 %v60
    %400 = vmatpush1.msra.mxu0 %v59
    %401 = vmatprep.subr.mxu0 %v63
    %402 = vmatpush1.msra.mxu0 %v62
    %403 = vmatprep.subr.mxu0 %v66
    %404 = vmatpush1.msra.mxu0 %v65
    %405 = vmatprep.subr.mxu0 %v69
    %406 = vmatpush1.msra.mxu0 %v68
    %407 = vmatprep.subr.mxu0 %v72
    %408 = vmatpush1.msra.mxu0 %v71
    %409 = vmatprep.subr.mxu0 %v75
    %410 = vmatpush1.msra.mxu0 %v74
    %411 = vmatprep.subr.mxu0 %v78
    %412 = vmatpush1.msra.mxu0 %v77
    %413 = vmatprep.subr.mxu0 %v81
    %414 = vmatpush1.msra.mxu0 %v80
    %415 = vmatprep.subr.mxu0 %v84
    %416 = vmatpush1.msra.mxu0 %v83
    %417 = vmatprep.subr.mxu0 %v87
    %418 = vmatpush1.msra.mxu0 %v86
    %419 = vmatprep.subr.mxu0 %v90
    %420 = vmatpush1.msra.mxu0 %v89
    %421 = vmatprep.subr.mxu0 %v93
    %422 = vmatpush1.msra.mxu0 %v92
    %423 = vmatprep.subr.mxu0 %v96
    %424 = vmatpush1.msra.mxu0 %v95
    %425 = vmatprep.subr.mxu0 %v99
    %426 = vmatpush1.msra.mxu0 %v98
    %427 = vmatprep.subr.mxu0 0.0
    %428 = vmatpush1.msra.mxu0 0.0
    %429 = vmatprep.subr.mxu0 0.0
    %430 = vmatpush1.msra.mxu0 0.0
    %431 = vmatprep.subr.mxu0 0.0
    %432 = vmatpush1.msra.mxu0 0.0
    %433 = vmatprep.subr.mxu0 0.0
    %434 = vmatpush1.msra.mxu0 0.0
    %435 = vmatprep.subr.mxu0 0.0
    %436 = vmatpush1.msra.mxu0 0.0
    %437 = vmatprep.subr.mxu0 0.0
    %438 = vmatpush1.msra.mxu0 0.0
    %439 = vmatprep.subr.mxu0 0.0
    %440 = vmatpush1.msra.mxu0 0.0
    %441 = vmatprep.subr.mxu0 0.0
    %442 = vmatpush1.msra.mxu0 0.0
    %443 = vmatprep.subr.mxu0 0.0
    %444 = vmatpush1.msra.mxu0 0.0
    %445 = vmatprep.subr.mxu0 0.0
    %446 = vmatpush1.msra.mxu0 0.0
    %447 = vmatprep.subr.mxu0 0.0
    %448 = vmatpush1.msra.mxu0 0.0
    %449 = vmatprep.subr.mxu0 0.0
    %450 = vmatpush1.msra.mxu0 0.0
    %451 = vmatprep.subr.mxu0 0.0
    %452 = vmatpush1.msra.mxu0 0.0
    %453 = vmatprep.subr.mxu0 0.0
    %454 = vmatpush1.msra.mxu0 0.0
    %455 = vmatprep.subr.mxu0 0.0
    %456 = vmatpush1.msra.mxu0 0.0
    %457 = vmatprep.subr.mxu0 0.0
    %458 = vmatpush1.msra.mxu0 0.0
    %459 = vmatprep.mubr.f32.mxu0 0.0
    %460 = vmatmul.mubr.f32.gmra.mrb[0].mxu0 0.0
    %v461 = vpop.f32.mrb[0].mxu0
    %v462 = vadd.f32 0.0, %v461
    %v463 = vpop.f32.mrb[0].mxu0
    %v464 = vadd.f32 0.0, %v463
    %465 = vdwg.mxu0
    %466 = vmatprep.subr.mxu0 0.0
    %467 = vmatpush1.msra.mxu0 %v55
    %468 = vmatprep.subr.mxu0 0.0
    %469 = vmatpush1.msra.mxu0 %v58
    %470 = vmatprep.subr.mxu0 0.0
    %471 = vmatpush1.msra.mxu0 %v61
    %472 = vmatprep.subr.mxu0 0.0
    %473 = vmatpush1.msra.mxu0 %v64
    %474 = vmatprep.subr.mxu0 0.0
    %475 = vmatpush1.msra.mxu0 %v67
    %476 = vmatprep.subr.mxu0 0.0
    %477 = vmatpush1.msra.mxu0 %v70
    %478 = vmatprep.subr.mxu0 0.0
    %479 = vmatpush1.msra.mxu0 %v73
    %480 = vmatprep.subr.mxu0 0.0
    %481 = vmatpush1.msra.mxu0 %v76
    %482 = vmatprep.subr.mxu0 0.0
    %483 = vmatpush1.msra.mxu0 %v79
    %484 = vmatprep.subr.mxu0 0.0
    %485 = vmatpush1.msra.mxu0 %v82
    %486 = vmatprep.subr.mxu0 0.0
    %487 = vmatpush1.msra.mxu0 %v85
    %488 = vmatprep.subr.mxu0 0.0
    %489 = vmatpush1.msra.mxu0 %v88
    %490 = vmatprep.subr.mxu0 0.0
    %491 = vmatpush1.msra.mxu0 %v91
    %492 = vmatprep.subr.mxu0 0.0
    %493 = vmatpush1.msra.mxu0 %v94
    %494 = vmatprep.subr.mxu0 0.0
    %495 = vmatpush1.msra.mxu0 %v97
    %496 = vmatprep.subr.mxu0 0.0
    %497 = vmatpush1.msra.mxu0 %v100
    %498 = vmatprep.subr.mxu0 0.0
    %499 = vmatpush1.msra.mxu0 0.0
    %500 = vmatprep.subr.mxu0 0.0
    %501 = vmatpush1.msra.mxu0 0.0
    %502 = vmatprep.subr.mxu0 0.0
    %503 = vmatpush1.msra.mxu0 0.0
    %504 = vmatprep.subr.mxu0 0.0
    %505 = vmatpush1.msra.mxu0 0.0
    %506 = vmatprep.subr.mxu0 0.0
    %507 = vmatpush1.msra.mxu0 0.0
    %508 = vmatprep.subr.mxu0 0.0
    %509 = vmatpush1.msra.mxu0 0.0
    %510 = vmatprep.subr.mxu0 0.0
    %511 = vmatpush1.msra.mxu0 0.0
    %512 = vmatprep.subr.mxu0 0.0
    %513 = vmatpush1.msra.mxu0 0.0
    %514 = vmatprep.subr.mxu0 0.0
    %515 = vmatpush1.msra.mxu0 0.0
    %516 = vmatprep.subr.mxu0 0.0
    %517 = vmatpush1.msra.mxu0 0.0
    %518 = vmatprep.subr.mxu0 0.0
    %519 = vmatpush1.msra.mxu0 0.0
    %520 = vmatprep.subr.mxu0 0.0
    %521 = vmatpush1.msra.mxu0 0.0
    %522 = vmatprep.subr.mxu0 0.0
    %523 = vmatpush1.msra.mxu0 0.0
    %524 = vmatprep.subr.mxu0 0.0
    %525 = vmatpush1.msra.mxu0 0.0
    %526 = vmatprep.subr.mxu0 0.0
    %527 = vmatpush1.msra.mxu0 0.0
    %528 = vmatprep.subr.mxu0 0.0
    %529 = vmatpush1.msra.mxu0 0.0
    %530 = vmatprep.mubr.f32.mxu0 0.0
    %531 = vmatmul.mubr.f32.gmra.mrb[0].mxu0 0.0
    %v532 = vpop.f32.mrb[0].mxu0
    %v533 = vadd.f32 0.0, %v532
    %v534 = vpop.f32.mrb[0].mxu0
    %535 = vdwg.mxu0
    %v536 = vadd.f32 %v310, %v462
    %v537 = vxor.u32 %v536, 2147483648
    %v538 = vmul.f32 %v537, 1.442695
    %v539 = vpow.pop %v538
    %v540 = vadd.f32 %v539, 1.0
    %v541 = vrcp.pop %v540
    %v542 = vmul.f32 1.0, %v541
    %v543 = vadd.f32 %v312, %v464
    %v544 = vxor.u32 %v543, 2147483648
    %v545 = vmul.f32 %v544, 1.442695
    %v546 = vpow.pop %v545
    %v547 = vadd.f32 %v546, 1.0
    %v548 = vrcp.pop %v547
    %v549 = vmul.f32 1.0, %v548
    %v550 = vlaneseq
    %v551 = vshrl.u32 %v550, 7
    %v552 = vsub.s32 0, %v551
    %v553 = vrot.slane %v105, %v552
    %v554 = vadd.f32 %v533, %v553
    %v555 = vmul.f32 %v542, %v554
    %v556 = vadd.f32 %v387, %v555
    %v557 = vtanh.pop %v556
    %v558 = vsub.f32 1.0, %v549
    %v559 = vmul.f32 %v558, %v557
    %v560 = vmul.f32 %v549, 0.0
    %v561 = vadd.f32 %v559, %v560
    %562 = vmatprep.subr.mxu0 %v54
    %563 = vmatpush1.msra.mxu0 %v53
    %564 = vmatprep.subr.mxu0 %v57
    %565 = vmatpush1.msra.mxu0 %v56
    %566 = vmatprep.subr.mxu0 %v60
    %567 = vmatpush1.msra.mxu0 %v59
    %568 = vmatprep.subr.mxu0 %v63
    %569 = vmatpush1.msra.mxu0 %v62
    %570 = vmatprep.subr.mxu0 %v66
    %571 = vmatpush1.msra.mxu0 %v65
    %572 = vmatprep.subr.mxu0 %v69
    %573 = vmatpush1.msra.mxu0 %v68
    %574 = vmatprep.subr.mxu0 %v72
    %575 = vmatpush1.msra.mxu0 %v71
    %576 = vmatprep.subr.mxu0 %v75
    %577 = vmatpush1.msra.mxu0 %v74
    %578 = vmatprep.subr.mxu0 %v78
    %579 = vmatpush1.msra.mxu0 %v77
    %580 = vmatprep.subr.mxu0 %v81
    %581 = vmatpush1.msra.mxu0 %v80
    %582 = vmatprep.subr.mxu0 %v84
    %583 = vmatpush1.msra.mxu0 %v83
    %584 = vmatprep.subr.mxu0 %v87
    %585 = vmatpush1.msra.mxu0 %v86
    %586 = vmatprep.subr.mxu0 %v90
    %587 = vmatpush1.msra.mxu0 %v89
    %588 = vmatprep.subr.mxu0 %v93
    %589 = vmatpush1.msra.mxu0 %v92
    %590 = vmatprep.subr.mxu0 %v96
    %591 = vmatpush1.msra.mxu0 %v95
    %592 = vmatprep.subr.mxu0 %v99
    %593 = vmatpush1.msra.mxu0 %v98
    %594 = vmatprep.subr.mxu0 0.0
    %595 = vmatpush1.msra.mxu0 0.0
    %596 = vmatprep.subr.mxu0 0.0
    %597 = vmatpush1.msra.mxu0 0.0
    %598 = vmatprep.subr.mxu0 0.0
    %599 = vmatpush1.msra.mxu0 0.0
    %600 = vmatprep.subr.mxu0 0.0
    %601 = vmatpush1.msra.mxu0 0.0
    %602 = vmatprep.subr.mxu0 0.0
    %603 = vmatpush1.msra.mxu0 0.0
    %604 = vmatprep.subr.mxu0 0.0
    %605 = vmatpush1.msra.mxu0 0.0
    %606 = vmatprep.subr.mxu0 0.0
    %607 = vmatpush1.msra.mxu0 0.0
    %608 = vmatprep.subr.mxu0 0.0
    %609 = vmatpush1.msra.mxu0 0.0
    %610 = vmatprep.subr.mxu0 0.0
    %611 = vmatpush1.msra.mxu0 0.0
    %612 = vmatprep.subr.mxu0 0.0
    %613 = vmatpush1.msra.mxu0 0.0
    %614 = vmatprep.subr.mxu0 0.0
    %615 = vmatpush1.msra.mxu0 0.0
    %616 = vmatprep.subr.mxu0 0.0
    %617 = vmatpush1.msra.mxu0 0.0
    %618 = vmatprep.subr.mxu0 0.0
    %619 = vmatpush1.msra.mxu0 0.0
    %620 = vmatprep.subr.mxu0 0.0
    %621 = vmatpush1.msra.mxu0 0.0
    %622 = vmatprep.subr.mxu0 0.0
    %623 = vmatpush1.msra.mxu0 0.0
    %624 = vmatprep.subr.mxu0 0.0
    %625 = vmatpush1.msra.mxu0 0.0
    %626 = vmatprep.mubr.f32.mxu0 0.0
    %627 = vmatmul.mubr.f32.gmra.mrb[0].mxu0 %v561
    %v628 = vpop.f32.mrb[0].mxu0
    %v629 = vadd.f32 0.0, %v628
    %v630 = vpop.f32.mrb[0].mxu0
    %v631 = vadd.f32 0.0, %v630
    %632 = vdwg.mxu0
    %633 = vmatprep.subr.mxu0 0.0
    %634 = vmatpush1.msra.mxu0 %v55
    %635 = vmatprep.subr.mxu0 0.0
    %636 = vmatpush1.msra.mxu0 %v58
    %637 = vmatprep.subr.mxu0 0.0
    %638 = vmatpush1.msra.mxu0 %v61
    %639 = vmatprep.subr.mxu0 0.0
    %640 = vmatpush1.msra.mxu0 %v64
    %641 = vmatprep.subr.mxu0 0.0
    %642 = vmatpush1.msra.mxu0 %v67
    %643 = vmatprep.subr.mxu0 0.0
    %644 = vmatpush1.msra.mxu0 %v70
    %645 = vmatprep.subr.mxu0 0.0
    %646 = vmatpush1.msra.mxu0 %v73
    %647 = vmatprep.subr.mxu0 0.0
    %648 = vmatpush1.msra.mxu0 %v76
    %649 = vmatprep.subr.mxu0 0.0
    %650 = vmatpush1.msra.mxu0 %v79
    %651 = vmatprep.subr.mxu0 0.0
    %652 = vmatpush1.msra.mxu0 %v82
    %653 = vmatprep.subr.mxu0 0.0
    %654 = vmatpush1.msra.mxu0 %v85
    %655 = vmatprep.subr.mxu0 0.0
    %656 = vmatpush1.msra.mxu0 %v88
    %657 = vmatprep.subr.mxu0 0.0
    %658 = vmatpush1.msra.mxu0 %v91
    %659 = vmatprep.subr.mxu0 0.0
    %660 = vmatpush1.msra.mxu0 %v94
    %661 = vmatprep.subr.mxu0 0.0
    %662 = vmatpush1.msra.mxu0 %v97
    %663 = vmatprep.subr.mxu0 0.0
    %664 = vmatpush1.msra.mxu0 %v100
    %665 = vmatprep.subr.mxu0 0.0
    %666 = vmatpush1.msra.mxu0 0.0
    %667 = vmatprep.subr.mxu0 0.0
    %668 = vmatpush1.msra.mxu0 0.0
    %669 = vmatprep.subr.mxu0 0.0
    %670 = vmatpush1.msra.mxu0 0.0
    %671 = vmatprep.subr.mxu0 0.0
    %672 = vmatpush1.msra.mxu0 0.0
    %673 = vmatprep.subr.mxu0 0.0
    %674 = vmatpush1.msra.mxu0 0.0
    %675 = vmatprep.subr.mxu0 0.0
    %676 = vmatpush1.msra.mxu0 0.0
    %677 = vmatprep.subr.mxu0 0.0
    %678 = vmatpush1.msra.mxu0 0.0
    %679 = vmatprep.subr.mxu0 0.0
    %680 = vmatpush1.msra.mxu0 0.0
    %681 = vmatprep.subr.mxu0 0.0
    %682 = vmatpush1.msra.mxu0 0.0
    %683 = vmatprep.subr.mxu0 0.0
    %684 = vmatpush1.msra.mxu0 0.0
    %685 = vmatprep.subr.mxu0 0.0
    %686 = vmatpush1.msra.mxu0 0.0
    %687 = vmatprep.subr.mxu0 0.0
    %688 = vmatpush1.msra.mxu0 0.0
    %689 = vmatprep.subr.mxu0 0.0
    %690 = vmatpush1.msra.mxu0 0.0
    %691 = vmatprep.subr.mxu0 0.0
    %692 = vmatpush1.msra.mxu0 0.0
    %693 = vmatprep.subr.mxu0 0.0
    %694 = vmatpush1.msra.mxu0 0.0
    %695 = vmatprep.subr.mxu0 0.0
    %696 = vmatpush1.msra.mxu0 0.0
    %697 = vmatprep.mubr.f32.mxu0 0.0
    %698 = vmatmul.mubr.f32.gmra.mrb[0].mxu0 %v561
    %v699 = vpop.f32.mrb[0].mxu0
    %v700 = vadd.f32 0.0, %v699
    %v701 = vpop.f32.mrb[0].mxu0
    %702 = vdwg.mxu0
    %v704 = vrot.slane %v629, 6
    %v706 = vadd.f32 %v310, %v704
    %v707 = vxor.u32 %v706, 2147483648
    %v708 = vmul.f32 %v707, 1.442695
    %v709 = vpow.pop %v708
    %v710 = vadd.f32 %v709, 1.0
    %v711 = vrcp.pop %v710
    %v712 = vmul.f32 1.0, %v711
    %v714 = vrot.slane %v631, 6
    %v716 = vadd.f32 %v312, %v714
    %v717 = vxor.u32 %v716, 2147483648
    %v718 = vmul.f32 %v717, 1.442695
    %v719 = vpow.pop %v718
    %v720 = vadd.f32 %v719, 1.0
    %v721 = vrcp.pop %v720
    %v722 = vmul.f32 1.0, %v721
    %v723 = vadd.f32 %v700, %v553
    %v725 = vrot.slane %v723, 6
    %v727 = vmul.f32 %v712, %v725
    %v728 = vadd.f32 %v387, %v727
    %v729 = vtanh.pop %v728
    %v730 = vsub.f32 1.0, %v722
    %v731 = vmul.f32 %v730, %v729
    %v733 = vrot.slane %v561, 6
    %v735 = vmul.f32 %v722, %v733
    %v736 = vadd.f32 %v731, %v735
    %v738 = vrot.slane %v736, 2
    %740 = vmatprep.subr.mxu0 %v54
    %741 = vmatpush1.msra.mxu0 %v53
    %742 = vmatprep.subr.mxu0 %v57
    %743 = vmatpush1.msra.mxu0 %v56
    %744 = vmatprep.subr.mxu0 %v60
    %745 = vmatpush1.msra.mxu0 %v59
    %746 = vmatprep.subr.mxu0 %v63
    %747 = vmatpush1.msra.mxu0 %v62
    %748 = vmatprep.subr.mxu0 %v66
    %749 = vmatpush1.msra.mxu0 %v65
    %750 = vmatprep.subr.mxu0 %v69
    %751 = vmatpush1.msra.mxu0 %v68
    %752 = vmatprep.subr.mxu0 %v72
    %753 = vmatpush1.msra.mxu0 %v71
    %754 = vmatprep.subr.mxu0 %v75
    %755 = vmatpush1.msra.mxu0 %v74
    %756 = vmatprep.subr.mxu0 %v78
    %757 = vmatpush1.msra.mxu0 %v77
    %758 = vmatprep.subr.mxu0 %v81
    %759 = vmatpush1.msra.mxu0 %v80
    %760 = vmatprep.subr.mxu0 %v84
    %761 = vmatpush1.msra.mxu0 %v83
    %762 = vmatprep.subr.mxu0 %v87
    %763 = vmatpush1.msra.mxu0 %v86
    %764 = vmatprep.subr.mxu0 %v90
    %765 = vmatpush1.msra.mxu0 %v89
    %766 = vmatprep.subr.mxu0 %v93
    %767 = vmatpush1.msra.mxu0 %v92
    %768 = vmatprep.subr.mxu0 %v96
    %769 = vmatpush1.msra.mxu0 %v95
    %770 = vmatprep.subr.mxu0 %v99
    %771 = vmatpush1.msra.mxu0 %v98
    %772 = vmatprep.subr.mxu0 0.0
    %773 = vmatpush1.msra.mxu0 0.0
    %774 = vmatprep.subr.mxu0 0.0
    %775 = vmatpush1.msra.mxu0 0.0
    %776 = vmatprep.subr.mxu0 0.0
    %777 = vmatpush1.msra.mxu0 0.0
    %778 = vmatprep.subr.mxu0 0.0
    %779 = vmatpush1.msra.mxu0 0.0
    %780 = vmatprep.subr.mxu0 0.0
    %781 = vmatpush1.msra.mxu0 0.0
    %782 = vmatprep.subr.mxu0 0.0
    %783 = vmatpush1.msra.mxu0 0.0
    %784 = vmatprep.subr.mxu0 0.0
    %785 = vmatpush1.msra.mxu0 0.0
    %786 = vmatprep.subr.mxu0 0.0
    %787 = vmatpush1.msra.mxu0 0.0
    %788 = vmatprep.subr.mxu0 0.0
    %789 = vmatpush1.msra.mxu0 0.0
    %790 = vmatprep.subr.mxu0 0.0
    %791 = vmatpush1.msra.mxu0 0.0
    %792 = vmatprep.subr.mxu0 0.0
    %793 = vmatpush1.msra.mxu0 0.0
    %794 = vmatprep.subr.mxu0 0.0
    %795 = vmatpush1.msra.mxu0 0.0
    %796 = vmatprep.subr.mxu0 0.0
    %797 = vmatpush1.msra.mxu0 0.0
    %798 = vmatprep.subr.mxu0 0.0
    %799 = vmatpush1.msra.mxu0 0.0
    %800 = vmatprep.subr.mxu0 0.0
    %801 = vmatpush1.msra.mxu0 0.0
    %802 = vmatprep.subr.mxu0 0.0
    %803 = vmatpush1.msra.mxu0 0.0
    %804 = vmatprep.mubr.f32.mxu0 0.0
    %805 = vmatmul.mubr.f32.gmra.mrb[0].mxu0 %v738
    %v806 = vpop.f32.mrb[0].mxu0
    %v807 = vadd.f32 0.0, %v806
    %v808 = vpop.f32.mrb[0].mxu0
    %v809 = vadd.f32 0.0, %v808
    %810 = vdwg.mxu0
    %811 = vmatprep.subr.mxu0 0.0
    %812 = vmatpush1.msra.mxu0 %v55
    %813 = vmatprep.subr.mxu0 0.0
    %814 = vmatpush1.msra.mxu0 %v58
    %815 = vmatprep.subr.mxu0 0.0
    %816 = vmatpush1.msra.mxu0 %v61
    %817 = vmatprep.subr.mxu0 0.0
    %818 = vmatpush1.msra.mxu0 %v64
    %819 = vmatprep.subr.mxu0 0.0
    %820 = vmatpush1.msra.mxu0 %v67
    %821 = vmatprep.subr.mxu0 0.0
    %822 = vmatpush1.msra.mxu0 %v70
    %823 = vmatprep.subr.mxu0 0.0
    %824 = vmatpush1.msra.mxu0 %v73
    %825 = vmatprep.subr.mxu0 0.0
    %826 = vmatpush1.msra.mxu0 %v76
    %827 = vmatprep.subr.mxu0 0.0
    %828 = vmatpush1.msra.mxu0 %v79
    %829 = vmatprep.subr.mxu0 0.0
    %830 = vmatpush1.msra.mxu0 %v82
    %831 = vmatprep.subr.mxu0 0.0
    %832 = vmatpush1.msra.mxu0 %v85
    %833 = vmatprep.subr.mxu0 0.0
    %834 = vmatpush1.msra.mxu0 %v88
    %835 = vmatprep.subr.mxu0 0.0
    %836 = vmatpush1.msra.mxu0 %v91
    %837 = vmatprep.subr.mxu0 0.0
    %838 = vmatpush1.msra.mxu0 %v94
    %839 = vmatprep.subr.mxu0 0.0
    %840 = vmatpush1.msra.mxu0 %v97
    %841 = vmatprep.subr.mxu0 0.0
    %842 = vmatpush1.msra.mxu0 %v100
    %843 = vmatprep.subr.mxu0 0.0
    %844 = vmatpush1.msra.mxu0 0.0
    %845 = vmatprep.subr.mxu0 0.0
    %846 = vmatpush1.msra.mxu0 0.0
    %847 = vmatprep.subr.mxu0 0.0
    %848 = vmatpush1.msra.mxu0 0.0
    %849 = vmatprep.subr.mxu0 0.0
    %850 = vmatpush1.msra.mxu0 0.0
    %851 = vmatprep.subr.mxu0 0.0
    %852 = vmatpush1.msra.mxu0 0.0
    %853 = vmatprep.subr.mxu0 0.0
    %854 = vmatpush1.msra.mxu0 0.0
    %855 = vmatprep.subr.mxu0 0.0
    %856 = vmatpush1.msra.mxu0 0.0
    %857 = vmatprep.subr.mxu0 0.0
    %858 = vmatpush1.msra.mxu0 0.0
    %859 = vmatprep.subr.mxu0 0.0
    %860 = vmatpush1.msra.mxu0 0.0
    %861 = vmatprep.subr.mxu0 0.0
    %862 = vmatpush1.msra.mxu0 0.0
    %863 = vmatprep.subr.mxu0 0.0
    %864 = vmatpush1.msra.mxu0 0.0
    %865 = vmatprep.subr.mxu0 0.0
    %866 = vmatpush1.msra.mxu0 0.0
    %867 = vmatprep.subr.mxu0 0.0
    %868 = vmatpush1.msra.mxu0 0.0
    %869 = vmatprep.subr.mxu0 0.0
    %870 = vmatpush1.msra.mxu0 0.0
    %871 = vmatprep.subr.mxu0 0.0
    %872 = vmatpush1.msra.mxu0 0.0
    %873 = vmatprep.subr.mxu0 0.0
    %874 = vmatpush1.msra.mxu0 0.0
    %875 = vmatprep.mubr.f32.mxu0 0.0
    %876 = vmatmul.mubr.f32.gmra.mrb[0].mxu0 %v738
    %v877 = vpop.f32.mrb[0].mxu0
    %v878 = vadd.f32 0.0, %v877
    %v879 = vpop.f32.mrb[0].mxu0
    %880 = vdwg.mxu0
    %v882 = vrot.slane %v807, 4
    %v884 = vadd.f32 %v310, %v882
    %v885 = vxor.u32 %v884, 2147483648
    %v886 = vmul.f32 %v885, 1.442695
    %v887 = vpow.pop %v886
    %v888 = vadd.f32 %v887, 1.0
    %v889 = vrcp.pop %v888
    %v890 = vmul.f32 1.0, %v889
    %v892 = vrot.slane %v809, 4
    %v894 = vadd.f32 %v312, %v892
    %v895 = vxor.u32 %v894, 2147483648
    %v896 = vmul.f32 %v895, 1.442695
    %v897 = vpow.pop %v896
    %v898 = vadd.f32 %v897, 1.0
    %v899 = vrcp.pop %v898
    %v900 = vmul.f32 1.0, %v899
    %v901 = vadd.f32 %v878, %v553
    %v903 = vrot.slane %v901, 4
    %v905 = vmul.f32 %v890, %v903
    %v906 = vadd.f32 %v387, %v905
    %v907 = vtanh.pop %v906
    %v908 = vsub.f32 1.0, %v900
    %v909 = vmul.f32 %v908, %v907
    %v910 = vrot.slane %v736, 6
    %v912 = vmul.f32 %v900, %v910
    %v913 = vadd.f32 %v909, %v912
    %v915 = vrot.slane %v913, 4
    %917 = vmatprep.subr.mxu0 %v54
    %918 = vmatpush1.msra.mxu0 %v53
    %919 = vmatprep.subr.mxu0 %v57
    %920 = vmatpush1.msra.mxu0 %v56
    %921 = vmatprep.subr.mxu0 %v60
    %922 = vmatpush1.msra.mxu0 %v59
    %923 = vmatprep.subr.mxu0 %v63
    %924 = vmatpush1.msra.mxu0 %v62
    %925 = vmatprep.subr.mxu0 %v66
    %926 = vmatpush1.msra.mxu0 %v65
    %927 = vmatprep.subr.mxu0 %v69
    %928 = vmatpush1.msra.mxu0 %v68
    %929 = vmatprep.subr.mxu0 %v72
    %930 = vmatpush1.msra.mxu0 %v71
    %931 = vmatprep.subr.mxu0 %v75
    %932 = vmatpush1.msra.mxu0 %v74
    %933 = vmatprep.subr.mxu0 %v78
    %934 = vmatpush1.msra.mxu0 %v77
    %935 = vmatprep.subr.mxu0 %v81
    %936 = vmatpush1.msra.mxu0 %v80
    %937 = vmatprep.subr.mxu0 %v84
    %938 = vmatpush1.msra.mxu0 %v83
    %939 = vmatprep.subr.mxu0 %v87
    %940 = vmatpush1.msra.mxu0 %v86
    %941 = vmatprep.subr.mxu0 %v90
    %942 = vmatpush1.msra.mxu0 %v89
    %943 = vmatprep.subr.mxu0 %v93
    %944 = vmatpush1.msra.mxu0 %v92
    %945 = vmatprep.subr.mxu0 %v96
    %946 = vmatpush1.msra.mxu0 %v95
    %947 = vmatprep.subr.mxu0 %v99
    %948 = vmatpush1.msra.mxu0 %v98
    %949 = vmatprep.subr.mxu0 0.0
    %950 = vmatpush1.msra.mxu0 0.0
    %951 = vmatprep.subr.mxu0 0.0
    %952 = vmatpush1.msra.mxu0 0.0
    %953 = vmatprep.subr.mxu0 0.0
    %954 = vmatpush1.msra.mxu0 0.0
    %955 = vmatprep.subr.mxu0 0.0
    %956 = vmatpush1.msra.mxu0 0.0
    %957 = vmatprep.subr.mxu0 0.0
    %958 = vmatpush1.msra.mxu0 0.0
    %959 = vmatprep.subr.mxu0 0.0
    %960 = vmatpush1.msra.mxu0 0.0
    %961 = vmatprep.subr.mxu0 0.0
    %962 = vmatpush1.msra.mxu0 0.0
    %963 = vmatprep.subr.mxu0 0.0
    %964 = vmatpush1.msra.mxu0 0.0
    %965 = vmatprep.subr.mxu0 0.0
    %966 = vmatpush1.msra.mxu0 0.0
    %967 = vmatprep.subr.mxu0 0.0
    %968 = vmatpush1.msra.mxu0 0.0
    %969 = vmatprep.subr.mxu0 0.0
    %970 = vmatpush1.msra.mxu0 0.0
    %971 = vmatprep.subr.mxu0 0.0
    %972 = vmatpush1.msra.mxu0 0.0
    %973 = vmatprep.subr.mxu0 0.0
    %974 = vmatpush1.msra.mxu0 0.0
    %975 = vmatprep.subr.mxu0 0.0
    %976 = vmatpush1.msra.mxu0 0.0
    %977 = vmatprep.subr.mxu0 0.0
    %978 = vmatpush1.msra.mxu0 0.0
    %979 = vmatprep.subr.mxu0 0.0
    %980 = vmatpush1.msra.mxu0 0.0
    %981 = vmatprep.mubr.f32.mxu0 0.0
    %982 = vmatmul.mubr.f32.gmra.mrb[0].mxu0 %v915
    %v983 = vpop.f32.mrb[0].mxu0
    %v984 = vadd.f32 0.0, %v983
    %v985 = vpop.f32.mrb[0].mxu0
    %v986 = vadd.f32 0.0, %v985
    %987 = vdwg.mxu0
    %988 = vmatprep.subr.mxu0 0.0
    %989 = vmatpush1.msra.mxu0 %v55
    %990 = vmatprep.subr.mxu0 0.0
    %991 = vmatpush1.msra.mxu0 %v58
    %992 = vmatprep.subr.mxu0 0.0
    %993 = vmatpush1.msra.mxu0 %v61
    %994 = vmatprep.subr.mxu0 0.0
    %995 = vmatpush1.msra.mxu0 %v64
    %996 = vmatprep.subr.mxu0 0.0
    %997 = vmatpush1.msra.mxu0 %v67
    %998 = vmatprep.subr.mxu0 0.0
    %999 = vmatpush1.msra.mxu0 %v70
    %1000 = vmatprep.subr.mxu0 0.0
    %1001 = vmatpush1.msra.mxu0 %v73
    %1002 = vmatprep.subr.mxu0 0.0
    %1003 = vmatpush1.msra.mxu0 %v76
    %1004 = vmatprep.subr.mxu0 0.0
    %1005 = vmatpush1.msra.mxu0 %v79
    %1006 = vmatprep.subr.mxu0 0.0
    %1007 = vmatpush1.msra.mxu0 %v82
    %1008 = vmatprep.subr.mxu0 0.0
    %1009 = vmatpush1.msra.mxu0 %v85
    %1010 = vmatprep.subr.mxu0 0.0
    %1011 = vmatpush1.msra.mxu0 %v88
    %1012 = vmatprep.subr.mxu0 0.0
    %1013 = vmatpush1.msra.mxu0 %v91
    %1014 = vmatprep.subr.mxu0 0.0
    %1015 = vmatpush1.msra.mxu0 %v94
    %1016 = vmatprep.subr.mxu0 0.0
    %1017 = vmatpush1.msra.mxu0 %v97
    %1018 = vmatprep.subr.mxu0 0.0
    %1019 = vmatpush1.msra.mxu0 %v100
    %1020 = vmatprep.subr.mxu0 0.0
    %1021 = vmatpush1.msra.mxu0 0.0
    %1022 = vmatprep.subr.mxu0 0.0
    %1023 = vmatpush1.msra.mxu0 0.0
    %1024 = vmatprep.subr.mxu0 0.0
    %1025 = vmatpush1.msra.mxu0 0.0
    %1026 = vmatprep.subr.mxu0 0.0
    %1027 = vmatpush1.msra.mxu0 0.0
    %1028 = vmatprep.subr.mxu0 0.0
    %1029 = vmatpush1.msra.mxu0 0.0
    %1030 = vmatprep.subr.mxu0 0.0
    %1031 = vmatpush1.msra.mxu0 0.0
    %1032 = vmatprep.subr.mxu0 0.0
    %1033 = vmatpush1.msra.mxu0 0.0
    %1034 = vmatprep.subr.mxu0 0.0
    %1035 = vmatpush1.msra.mxu0 0.0
    %1036 = vmatprep.subr.mxu0 0.0
    %1037 = vmatpush1.msra.mxu0 0.0
    %1038 = vmatprep.subr.mxu0 0.0
    %1039 = vmatpush1.msra.mxu0 0.0
    %1040 = vmatprep.subr.mxu0 0.0
    %1041 = vmatpush1.msra.mxu0 0.0
    %1042 = vmatprep.subr.mxu0 0.0
    %1043 = vmatpush1.msra.mxu0 0.0
    %1044 = vmatprep.subr.mxu0 0.0
    %1045 = vmatpush1.msra.mxu0 0.0
    %1046 = vmatprep.subr.mxu0 0.0
    %1047 = vmatpush1.msra.mxu0 0.0
    %1048 = vmatprep.subr.mxu0 0.0
    %1049 = vmatpush1.msra.mxu0 0.0
    %1050 = vmatprep.subr.mxu0 0.0
    %1051 = vmatpush1.msra.mxu0 0.0
    %1052 = vmatprep.mubr.f32.mxu0 0.0
    %1053 = vmatmul.mubr.f32.gmra.mrb[0].mxu0 %v915
    %v1054 = vpop.f32.mrb[0].mxu0
    %v1055 = vadd.f32 0.0, %v1054
    %v1056 = vpop.f32.mrb[0].mxu0
    %1057 = vdwg.mxu0
    %v1059 = vrot.slane %v984, 2
    %v1061 = vadd.f32 %v310, %v1059
    %v1062 = vxor.u32 %v1061, 2147483648
    %v1063 = vmul.f32 %v1062, 1.442695
    %v1064 = vpow.pop %v1063
    %v1065 = vadd.f32 %v1064, 1.0
    %v1066 = vrcp.pop %v1065
    %v1067 = vmul.f32 1.0, %v1066
    %v1069 = vrot.slane %v986, 2
    %v1071 = vadd.f32 %v312, %v1069
    %v1072 = vxor.u32 %v1071, 2147483648
    %v1073 = vmul.f32 %v1072, 1.442695
    %v1074 = vpow.pop %v1073
    %v1075 = vadd.f32 %v1074, 1.0
    %v1076 = vrcp.pop %v1075
    %v1077 = vmul.f32 1.0, %v1076
    %v1078 = vadd.f32 %v1055, %v553
    %v1080 = vrot.slane %v1078, 2
    %v1082 = vmul.f32 %v1067, %v1080
    %v1083 = vadd.f32 %v387, %v1082
    %v1084 = vtanh.pop %v1083
    %v1085 = vsub.f32 1.0, %v1077
    %v1086 = vmul.f32 %v1085, %v1084
    %v1087 = vrot.slane %v913, 6
    %v1089 = vmul.f32 %v1077, %v1087
    %v1090 = vadd.f32 %v1086, %v1089
    %v1092 = vrot.slane %v1090, 6
    %1094 = vmatprep.subr.mxu0 %v54
    %1095 = vmatpush1.msra.mxu0 %v53
    %1096 = vmatprep.subr.mxu0 %v57
    %1097 = vmatpush1.msra.mxu0 %v56
    %1098 = vmatprep.subr.mxu0 %v60
    %1099 = vmatpush1.msra.mxu0 %v59
    %1100 = vmatprep.subr.mxu0 %v63
    %1101 = vmatpush1.msra.mxu0 %v62
    %1102 = vmatprep.subr.mxu0 %v66
    %1103 = vmatpush1.msra.mxu0 %v65
    %1104 = vmatprep.subr.mxu0 %v69
    %1105 = vmatpush1.msra.mxu0 %v68
    %1106 = vmatprep.subr.mxu0 %v72
    %1107 = vmatpush1.msra.mxu0 %v71
    %1108 = vmatprep.subr.mxu0 %v75
    %1109 = vmatpush1.msra.mxu0 %v74
    %1110 = vmatprep.subr.mxu0 %v78
    %1111 = vmatpush1.msra.mxu0 %v77
    %1112 = vmatprep.subr.mxu0 %v81
    %1113 = vmatpush1.msra.mxu0 %v80
    %1114 = vmatprep.subr.mxu0 %v84
    %1115 = vmatpush1.msra.mxu0 %v83
    %1116 = vmatprep.subr.mxu0 %v87
    %1117 = vmatpush1.msra.mxu0 %v86
    %1118 = vmatprep.subr.mxu0 %v90
    %1119 = vmatpush1.msra.mxu0 %v89
    %1120 = vmatprep.subr.mxu0 %v93
    %1121 = vmatpush1.msra.mxu0 %v92
    %1122 = vmatprep.subr.mxu0 %v96
    %1123 = vmatpush1.msra.mxu0 %v95
    %1124 = vmatprep.subr.mxu0 %v99
    %1125 = vmatpush1.msra.mxu0 %v98
    %1126 = vmatprep.subr.mxu0 0.0
    %1127 = vmatpush1.msra.mxu0 0.0
    %1128 = vmatprep.subr.mxu0 0.0
    %1129 = vmatpush1.msra.mxu0 0.0
    %1130 = vmatprep.subr.mxu0 0.0
    %1131 = vmatpush1.msra.mxu0 0.0
    %1132 = vmatprep.subr.mxu0 0.0
    %1133 = vmatpush1.msra.mxu0 0.0
    %1134 = vmatprep.subr.mxu0 0.0
    %1135 = vmatpush1.msra.mxu0 0.0
    %1136 = vmatprep.subr.mxu0 0.0
    %1137 = vmatpush1.msra.mxu0 0.0
    %1138 = vmatprep.subr.mxu0 0.0
    %1139 = vmatpush1.msra.mxu0 0.0
    %1140 = vmatprep.subr.mxu0 0.0
    %1141 = vmatpush1.msra.mxu0 0.0
    %1142 = vmatprep.subr.mxu0 0.0
    %1143 = vmatpush1.msra.mxu0 0.0
    %1144 = vmatprep.subr.mxu0 0.0
    %1145 = vmatpush1.msra.mxu0 0.0
    %1146 = vmatprep.subr.mxu0 0.0
    %1147 = vmatpush1.msra.mxu0 0.0
    %1148 = vmatprep.subr.mxu0 0.0
    %1149 = vmatpush1.msra.mxu0 0.0
    %1150 = vmatprep.subr.mxu0 0.0
    %1151 = vmatpush1.msra.mxu0 0.0
    %1152 = vmatprep.subr.mxu0 0.0
    %1153 = vmatpush1.msra.mxu0 0.0
    %1154 = vmatprep.subr.mxu0 0.0
    %1155 = vmatpush1.msra.mxu0 0.0
    %1156 = vmatprep.subr.mxu0 0.0
    %1157 = vmatpush1.msra.mxu0 0.0
    %1158 = vmatprep.mubr.f32.mxu0 0.0
    %1159 = vmatmul.mubr.f32.gmra.mrb[0].mxu0 %v1092
    %v1160 = vpop.f32.mrb[0].mxu0
    %v1161 = vadd.f32 0.0, %v1160
    %v1162 = vpop.f32.mrb[0].mxu0
    %v1163 = vadd.f32 0.0, %v1162
    %1164 = vdwg.mxu0
    %1165 = vmatprep.subr.mxu0 0.0
    %1166 = vmatpush1.msra.mxu0 %v55
    %1167 = vmatprep.subr.mxu0 0.0
    %1168 = vmatpush1.msra.mxu0 %v58
    %1169 = vmatprep.subr.mxu0 0.0
    %1170 = vmatpush1.msra.mxu0 %v61
    %1171 = vmatprep.subr.mxu0 0.0
    %1172 = vmatpush1.msra.mxu0 %v64
    %1173 = vmatprep.subr.mxu0 0.0
    %1174 = vmatpush1.msra.mxu0 %v67
    %1175 = vmatprep.subr.mxu0 0.0
    %1176 = vmatpush1.msra.mxu0 %v70
    %1177 = vmatprep.subr.mxu0 0.0
    %1178 = vmatpush1.msra.mxu0 %v73
    %1179 = vmatprep.subr.mxu0 0.0
    %1180 = vmatpush1.msra.mxu0 %v76
    %1181 = vmatprep.subr.mxu0 0.0
    %1182 = vmatpush1.msra.mxu0 %v79
    %1183 = vmatprep.subr.mxu0 0.0
    %1184 = vmatpush1.msra.mxu0 %v82
    %1185 = vmatprep.subr.mxu0 0.0
    %1186 = vmatpush1.msra.mxu0 %v85
    %1187 = vmatprep.subr.mxu0 0.0
    %1188 = vmatpush1.msra.mxu0 %v88
    %1189 = vmatprep.subr.mxu0 0.0
    %1190 = vmatpush1.msra.mxu0 %v91
    %1191 = vmatprep.subr.mxu0 0.0
    %1192 = vmatpush1.msra.mxu0 %v94
    %1193 = vmatprep.subr.mxu0 0.0
    %1194 = vmatpush1.msra.mxu0 %v97
    %1195 = vmatprep.subr.mxu0 0.0
    %1196 = vmatpush1.msra.mxu0 %v100
    %1197 = vmatprep.subr.mxu0 0.0
    %1198 = vmatpush1.msra.mxu0 0.0
    %1199 = vmatprep.subr.mxu0 0.0
    %1200 = vmatpush1.msra.mxu0 0.0
    %1201 = vmatprep.subr.mxu0 0.0
    %1202 = vmatpush1.msra.mxu0 0.0
    %1203 = vmatprep.subr.mxu0 0.0
    %1204 = vmatpush1.msra.mxu0 0.0
    %1205 = vmatprep.subr.mxu0 0.0
    %1206 = vmatpush1.msra.mxu0 0.0
    %1207 = vmatprep.subr.mxu0 0.0
    %1208 = vmatpush1.msra.mxu0 0.0
    %1209 = vmatprep.subr.mxu0 0.0
    %1210 = vmatpush1.msra.mxu0 0.0
    %1211 = vmatprep.subr.mxu0 0.0
    %1212 = vmatpush1.msra.mxu0 0.0
    %1213 = vmatprep.subr.mxu0 0.0
    %1214 = vmatpush1.msra.mxu0 0.0
    %1215 = vmatprep.subr.mxu0 0.0
    %1216 = vmatpush1.msra.mxu0 0.0
    %1217 = vmatprep.subr.mxu0 0.0
    %1218 = vmatpush1.msra.mxu0 0.0
    %1219 = vmatprep.subr.mxu0 0.0
    %1220 = vmatpush1.msra.mxu0 0.0
    %1221 = vmatprep.subr.mxu0 0.0
    %1222 = vmatpush1.msra.mxu0 0.0
    %1223 = vmatprep.subr.mxu0 0.0
    %1224 = vmatpush1.msra.mxu0 0.0
    %1225 = vmatprep.subr.mxu0 0.0
    %1226 = vmatpush1.msra.mxu0 0.0
    %1227 = vmatprep.subr.mxu0 0.0
    %1228 = vmatpush1.msra.mxu0 0.0
    %1229 = vmatprep.mubr.f32.mxu0 0.0
    %1230 = vmatmul.mubr.f32.gmra.mrb[0].mxu0 %v1092
    %v1231 = vpop.f32.mrb[0].mxu0
    %v1232 = vadd.f32 0.0, %v1231
    %v1233 = vpop.f32.mrb[0].mxu0
    %1234 = vdwg.mxu0
    %v1235 = vadd.f32 %v316, %v1161
    %v1236 = vxor.u32 %v1235, 2147483648
    %v1237 = vmul.f32 %v1236, 1.442695
    %v1238 = vpow.pop %v1237
    %v1239 = vadd.f32 %v1238, 1.0
    %v1240 = vrcp.pop %v1239
    %v1241 = vmul.f32 1.0, %v1240
    %v1242 = vadd.f32 %v318, %v1163
    %v1243 = vxor.u32 %v1242, 2147483648
    %v1244 = vmul.f32 %v1243, 1.442695
    %v1245 = vpow.pop %v1244
    %v1246 = vadd.f32 %v1245, 1.0
    %v1247 = vrcp.pop %v1246
    %v1248 = vmul.f32 1.0, %v1247
    %v1249 = vadd.f32 %v1232, %v553
    %v1250 = vmul.f32 %v1241, %v1249
    %v1251 = vadd.f32 %v392, %v1250
    %v1252 = vtanh.pop %v1251
    %v1253 = vsub.f32 1.0, %v1248
    %v1254 = vmul.f32 %v1253, %v1252
    %v1255 = vmul.f32 %v1248, %v1092
    %v1256 = vadd.f32 %v1254, %v1255
    %1257 = vmatprep.subr.mxu0 %v54
    %1258 = vmatpush1.msra.mxu0 %v53
    %1259 = vmatprep.subr.mxu0 %v57
    %1260 = vmatpush1.msra.mxu0 %v56
    %1261 = vmatprep.subr.mxu0 %v60
    %1262 = vmatpush1.msra.mxu0 %v59
    %1263 = vmatprep.subr.mxu0 %v63
    %1264 = vmatpush1.msra.mxu0 %v62
    %1265 = vmatprep.subr.mxu0 %v66
    %1266 = vmatpush1.msra.mxu0 %v65
    %1267 = vmatprep.subr.mxu0 %v69
    %1268 = vmatpush1.msra.mxu0 %v68
    %1269 = vmatprep.subr.mxu0 %v72
    %1270 = vmatpush1.msra.mxu0 %v71
    %1271 = vmatprep.subr.mxu0 %v75
    %1272 = vmatpush1.msra.mxu0 %v74
    %1273 = vmatprep.subr.mxu0 %v78
    %1274 = vmatpush1.msra.mxu0 %v77
    %1275 = vmatprep.subr.mxu0 %v81
    %1276 = vmatpush1.msra.mxu0 %v80
    %1277 = vmatprep.subr.mxu0 %v84
    %1278 = vmatpush1.msra.mxu0 %v83
    %1279 = vmatprep.subr.mxu0 %v87
    %1280 = vmatpush1.msra.mxu0 %v86
    %1281 = vmatprep.subr.mxu0 %v90
    %1282 = vmatpush1.msra.mxu0 %v89
    %1283 = vmatprep.subr.mxu0 %v93
    %1284 = vmatpush1.msra.mxu0 %v92
    %1285 = vmatprep.subr.mxu0 %v96
    %1286 = vmatpush1.msra.mxu0 %v95
    %1287 = vmatprep.subr.mxu0 %v99
    %1288 = vmatpush1.msra.mxu0 %v98
    %1289 = vmatprep.subr.mxu0 0.0
    %1290 = vmatpush1.msra.mxu0 0.0
    %1291 = vmatprep.subr.mxu0 0.0
    %1292 = vmatpush1.msra.mxu0 0.0
    %1293 = vmatprep.subr.mxu0 0.0
    %1294 = vmatpush1.msra.mxu0 0.0
    %1295 = vmatprep.subr.mxu0 0.0
    %1296 = vmatpush1.msra.mxu0 0.0
    %1297 = vmatprep.subr.mxu0 0.0
    %1298 = vmatpush1.msra.mxu0 0.0
    %1299 = vmatprep.subr.mxu0 0.0
    %1300 = vmatpush1.msra.mxu0 0.0
    %1301 = vmatprep.subr.mxu0 0.0
    %1302 = vmatpush1.msra.mxu0 0.0
    %1303 = vmatprep.subr.mxu0 0.0
    %1304 = vmatpush1.msra.mxu0 0.0
    %1305 = vmatprep.subr.mxu0 0.0
    %1306 = vmatpush1.msra.mxu0 0.0
    %1307 = vmatprep.subr.mxu0 0.0
    %1308 = vmatpush1.msra.mxu0 0.0
    %1309 = vmatprep.subr.mxu0 0.0
    %1310 = vmatpush1.msra.mxu0 0.0
    %1311 = vmatprep.subr.mxu0 0.0
    %1312 = vmatpush1.msra.mxu0 0.0
    %1313 = vmatprep.subr.mxu0 0.0
    %1314 = vmatpush1.msra.mxu0 0.0
    %1315 = vmatprep.subr.mxu0 0.0
    %1316 = vmatpush1.msra.mxu0 0.0
    %1317 = vmatprep.subr.mxu0 0.0
    %1318 = vmatpush1.msra.mxu0 0.0
    %1319 = vmatprep.subr.mxu0 0.0
    %1320 = vmatpush1.msra.mxu0 0.0
    %1321 = vmatprep.mubr.f32.mxu0 0.0
    %1322 = vmatmul.mubr.f32.gmra.mrb[0].mxu0 %v1256
    %v1323 = vpop.f32.mrb[0].mxu0
    %v1324 = vadd.f32 0.0, %v1323
    %v1325 = vpop.f32.mrb[0].mxu0
    %v1326 = vadd.f32 0.0, %v1325
    %1327 = vdwg.mxu0
    %1328 = vmatprep.subr.mxu0 0.0
    %1329 = vmatpush1.msra.mxu0 %v55
    %1330 = vmatprep.subr.mxu0 0.0
    %1331 = vmatpush1.msra.mxu0 %v58
    %1332 = vmatprep.subr.mxu0 0.0
    %1333 = vmatpush1.msra.mxu0 %v61
    %1334 = vmatprep.subr.mxu0 0.0
    %1335 = vmatpush1.msra.mxu0 %v64
    %1336 = vmatprep.subr.mxu0 0.0
    %1337 = vmatpush1.msra.mxu0 %v67
    %1338 = vmatprep.subr.mxu0 0.0
    %1339 = vmatpush1.msra.mxu0 %v70
    %1340 = vmatprep.subr.mxu0 0.0
    %1341 = vmatpush1.msra.mxu0 %v73
    %1342 = vmatprep.subr.mxu0 0.0
    %1343 = vmatpush1.msra.mxu0 %v76
    %1344 = vmatprep.subr.mxu0 0.0
    %1345 = vmatpush1.msra.mxu0 %v79
    %1346 = vmatprep.subr.mxu0 0.0
    %1347 = vmatpush1.msra.mxu0 %v82
    %1348 = vmatprep.subr.mxu0 0.0
    %1349 = vmatpush1.msra.mxu0 %v85
    %1350 = vmatprep.subr.mxu0 0.0
    %1351 = vmatpush1.msra.mxu0 %v88
    %1352 = vmatprep.subr.mxu0 0.0
    %1353 = vmatpush1.msra.mxu0 %v91
    %1354 = vmatprep.subr.mxu0 0.0
    %1355 = vmatpush1.msra.mxu0 %v94
    %1356 = vmatprep.subr.mxu0 0.0
    %1357 = vmatpush1.msra.mxu0 %v97
    %1358 = vmatprep.subr.mxu0 0.0
    %1359 = vmatpush1.msra.mxu0 %v100
    %1360 = vmatprep.subr.mxu0 0.0
    %1361 = vmatpush1.msra.mxu0 0.0
    %1362 = vmatprep.subr.mxu0 0.0
    %1363 = vmatpush1.msra.mxu0 0.0
    %1364 = vmatprep.subr.mxu0 0.0
    %1365 = vmatpush1.msra.mxu0 0.0
    %1366 = vmatprep.subr.mxu0 0.0
    %1367 = vmatpush1.msra.mxu0 0.0
    %1368 = vmatprep.subr.mxu0 0.0
    %1369 = vmatpush1.msra.mxu0 0.0
    %1370 = vmatprep.subr.mxu0 0.0
    %1371 = vmatpush1.msra.mxu0 0.0
    %1372 = vmatprep.subr.mxu0 0.0
    %1373 = vmatpush1.msra.mxu0 0.0
    %1374 = vmatprep.subr.mxu0 0.0
    %1375 = vmatpush1.msra.mxu0 0.0
    %1376 = vmatprep.subr.mxu0 0.0
    %1377 = vmatpush1.msra.mxu0 0.0
    %1378 = vmatprep.subr.mxu0 0.0
    %1379 = vmatpush1.msra.mxu0 0.0
    %1380 = vmatprep.subr.mxu0 0.0
    %1381 = vmatpush1.msra.mxu0 0.0
    %1382 = vmatprep.subr.mxu0 0.0
    %1383 = vmatpush1.msra.mxu0 0.0
    %1384 = vmatprep.subr.mxu0 0.0
    %1385 = vmatpush1.msra.mxu0 0.0
    %1386 = vmatprep.subr.mxu0 0.0
    %1387 = vmatpush1.msra.mxu0 0.0
    %1388 = vmatprep.subr.mxu0 0.0
    %1389 = vmatpush1.msra.mxu0 0.0
    %1390 = vmatprep.subr.mxu0 0.0
    %1391 = vmatpush1.msra.mxu0 0.0
    %1392 = vmatprep.mubr.f32.mxu0 0.0
    %1393 = vmatmul.mubr.f32.gmra.mrb[0].mxu0 %v1256
    %v1394 = vpop.f32.mrb[0].mxu0
    %v1395 = vadd.f32 0.0, %v1394
    %v1396 = vpop.f32.mrb[0].mxu0
    %1397 = vdwg.mxu0
    %v1399 = vrot.slane %v1324, 6
    %v1401 = vadd.f32 %v316, %v1399
    %v1402 = vxor.u32 %v1401, 2147483648
    %v1403 = vmul.f32 %v1402, 1.442695
    %v1404 = vpow.pop %v1403
    %v1405 = vadd.f32 %v1404, 1.0
    %v1406 = vrcp.pop %v1405
    %v1407 = vmul.f32 1.0, %v1406
    %v1409 = vrot.slane %v1326, 6
    %v1411 = vadd.f32 %v318, %v1409
    %v1412 = vxor.u32 %v1411, 2147483648
    %v1413 = vmul.f32 %v1412, 1.442695
    %v1414 = vpow.pop %v1413
    %v1415 = vadd.f32 %v1414, 1.0
    %v1416 = vrcp.pop %v1415
    %v1417 = vmul.f32 1.0, %v1416
    %v1418 = vadd.f32 %v1395, %v553
    %v1420 = vrot.slane %v1418, 6
    %v1422 = vmul.f32 %v1407, %v1420
    %v1423 = vadd.f32 %v392, %v1422
    %v1424 = vtanh.pop %v1423
    %v1425 = vsub.f32 1.0, %v1417
    %v1426 = vmul.f32 %v1425, %v1424
    %v1428 = vrot.slane %v1256, 6
    %v1430 = vmul.f32 %v1417, %v1428
    %v1431 = vadd.f32 %v1426, %v1430
    %v1433 = vrot.slane %v1431, 2
    %1435 = vmatprep.subr.mxu0 %v54
    %1436 = vmatpush1.msra.mxu0 %v53
    %1437 = vmatprep.subr.mxu0 %v57
    %1438 = vmatpush1.msra.mxu0 %v56
    %1439 = vmatprep.subr.mxu0 %v60
    %1440 = vmatpush1.msra.mxu0 %v59
    %1441 = vmatprep.subr.mxu0 %v63
    %1442 = vmatpush1.msra.mxu0 %v62
    %1443 = vmatprep.subr.mxu0 %v66
    %1444 = vmatpush1.msra.mxu0 %v65
    %1445 = vmatprep.subr.mxu0 %v69
    %1446 = vmatpush1.msra.mxu0 %v68
    %1447 = vmatprep.subr.mxu0 %v72
    %1448 = vmatpush1.msra.mxu0 %v71
    %1449 = vmatprep.subr.mxu0 %v75
    %1450 = vmatpush1.msra.mxu0 %v74
    %1451 = vmatprep.subr.mxu0 %v78
    %1452 = vmatpush1.msra.mxu0 %v77
    %1453 = vmatprep.subr.mxu0 %v81
    %1454 = vmatpush1.msra.mxu0 %v80
    %1455 = vmatprep.subr.mxu0 %v84
    %1456 = vmatpush1.msra.mxu0 %v83
    %1457 = vmatprep.subr.mxu0 %v87
    %1458 = vmatpush1.msra.mxu0 %v86
    %1459 = vmatprep.subr.mxu0 %v90
    %1460 = vmatpush1.msra.mxu0 %v89
    %1461 = vmatprep.subr.mxu0 %v93
    %1462 = vmatpush1.msra.mxu0 %v92
    %1463 = vmatprep.subr.mxu0 %v96
    %1464 = vmatpush1.msra.mxu0 %v95
    %1465 = vmatprep.subr.mxu0 %v99
    %1466 = vmatpush1.msra.mxu0 %v98
    %1467 = vmatprep.subr.mxu0 0.0
    %1468 = vmatpush1.msra.mxu0 0.0
    %1469 = vmatprep.subr.mxu0 0.0
    %1470 = vmatpush1.msra.mxu0 0.0
    %1471 = vmatprep.subr.mxu0 0.0
    %1472 = vmatpush1.msra.mxu0 0.0
    %1473 = vmatprep.subr.mxu0 0.0
    %1474 = vmatpush1.msra.mxu0 0.0
    %1475 = vmatprep.subr.mxu0 0.0
    %1476 = vmatpush1.msra.mxu0 0.0
    %1477 = vmatprep.subr.mxu0 0.0
    %1478 = vmatpush1.msra.mxu0 0.0
    %1479 = vmatprep.subr.mxu0 0.0
    %1480 = vmatpush1.msra.mxu0 0.0
    %1481 = vmatprep.subr.mxu0 0.0
    %1482 = vmatpush1.msra.mxu0 0.0
    %1483 = vmatprep.subr.mxu0 0.0
    %1484 = vmatpush1.msra.mxu0 0.0
    %1485 = vmatprep.subr.mxu0 0.0
    %1486 = vmatpush1.msra.mxu0 0.0
    %1487 = vmatprep.subr.mxu0 0.0
    %1488 = vmatpush1.msra.mxu0 0.0
    %1489 = vmatprep.subr.mxu0 0.0
    %1490 = vmatpush1.msra.mxu0 0.0
    %1491 = vmatprep.subr.mxu0 0.0
    %1492 = vmatpush1.msra.mxu0 0.0
    %1493 = vmatprep.subr.mxu0 0.0
    %1494 = vmatpush1.msra.mxu0 0.0
    %1495 = vmatprep.subr.mxu0 0.0
    %1496 = vmatpush1.msra.mxu0 0.0
    %1497 = vmatprep.subr.mxu0 0.0
    %1498 = vmatpush1.msra.mxu0 0.0
    %1499 = vmatprep.mubr.f32.mxu0 0.0
    %1500 = vmatmul.mubr.f32.gmra.mrb[0].mxu0 %v1433
    %v1501 = vpop.f32.mrb[0].mxu0
    %v1502 = vadd.f32 0.0, %v1501
    %v1503 = vpop.f32.mrb[0].mxu0
    %v1504 = vadd.f32 0.0, %v1503
    %1505 = vdwg.mxu0
    %1506 = vmatprep.subr.mxu0 0.0
    %1507 = vmatpush1.msra.mxu0 %v55
    %1508 = vmatprep.subr.mxu0 0.0
    %1509 = vmatpush1.msra.mxu0 %v58
    %1510 = vmatprep.subr.mxu0 0.0
    %1511 = vmatpush1.msra.mxu0 %v61
    %1512 = vmatprep.subr.mxu0 0.0
    %1513 = vmatpush1.msra.mxu0 %v64
    %1514 = vmatprep.subr.mxu0 0.0
    %1515 = vmatpush1.msra.mxu0 %v67
    %1516 = vmatprep.subr.mxu0 0.0
    %1517 = vmatpush1.msra.mxu0 %v70
    %1518 = vmatprep.subr.mxu0 0.0
    %1519 = vmatpush1.msra.mxu0 %v73
    %1520 = vmatprep.subr.mxu0 0.0
    %1521 = vmatpush1.msra.mxu0 %v76
    %1522 = vmatprep.subr.mxu0 0.0
    %1523 = vmatpush1.msra.mxu0 %v79
    %1524 = vmatprep.subr.mxu0 0.0
    %1525 = vmatpush1.msra.mxu0 %v82
    %1526 = vmatprep.subr.mxu0 0.0
    %1527 = vmatpush1.msra.mxu0 %v85
    %1528 = vmatprep.subr.mxu0 0.0
    %1529 = vmatpush1.msra.mxu0 %v88
    %1530 = vmatprep.subr.mxu0 0.0
    %1531 = vmatpush1.msra.mxu0 %v91
    %1532 = vmatprep.subr.mxu0 0.0
    %1533 = vmatpush1.msra.mxu0 %v94
    %1534 = vmatprep.subr.mxu0 0.0
    %1535 = vmatpush1.msra.mxu0 %v97
    %1536 = vmatprep.subr.mxu0 0.0
    %1537 = vmatpush1.msra.mxu0 %v100
    %1538 = vmatprep.subr.mxu0 0.0
    %1539 = vmatpush1.msra.mxu0 0.0
    %1540 = vmatprep.subr.mxu0 0.0
    %1541 = vmatpush1.msra.mxu0 0.0
    %1542 = vmatprep.subr.mxu0 0.0
    %1543 = vmatpush1.msra.mxu0 0.0
    %1544 = vmatprep.subr.mxu0 0.0
    %1545 = vmatpush1.msra.mxu0 0.0
    %1546 = vmatprep.subr.mxu0 0.0
    %1547 = vmatpush1.msra.mxu0 0.0
    %1548 = vmatprep.subr.mxu0 0.0
    %1549 = vmatpush1.msra.mxu0 0.0
    %1550 = vmatprep.subr.mxu0 0.0
    %1551 = vmatpush1.msra.mxu0 0.0
    %1552 = vmatprep.subr.mxu0 0.0
    %1553 = vmatpush1.msra.mxu0 0.0
    %1554 = vmatprep.subr.mxu0 0.0
    %1555 = vmatpush1.msra.mxu0 0.0
    %1556 = vmatprep.subr.mxu0 0.0
    %1557 = vmatpush1.msra.mxu0 0.0
    %1558 = vmatprep.subr.mxu0 0.0
    %1559 = vmatpush1.msra.mxu0 0.0
    %1560 = vmatprep.subr.mxu0 0.0
    %1561 = vmatpush1.msra.mxu0 0.0
    %1562 = vmatprep.subr.mxu0 0.0
    %1563 = vmatpush1.msra.mxu0 0.0
    %1564 = vmatprep.subr.mxu0 0.0
    %1565 = vmatpush1.msra.mxu0 0.0
    %1566 = vmatprep.subr.mxu0 0.0
    %1567 = vmatpush1.msra.mxu0 0.0
    %1568 = vmatprep.subr.mxu0 0.0
    %1569 = vmatpush1.msra.mxu0 0.0
    %1570 = vmatprep.mubr.f32.mxu0 0.0
    %1571 = vmatmul.mubr.f32.gmra.mrb[0].mxu0 %v1433
    %v1572 = vpop.f32.mrb[0].mxu0
    %v1573 = vadd.f32 0.0, %v1572
    %v1574 = vpop.f32.mrb[0].mxu0
    %1575 = vdwg.mxu0
    %v1577 = vrot.slane %v1502, 4
    %v1579 = vadd.f32 %v316, %v1577
    %v1580 = vxor.u32 %v1579, 2147483648
    %v1581 = vmul.f32 %v1580, 1.442695
    %v1582 = vpow.pop %v1581
    %v1583 = vadd.f32 %v1582, 1.0
    %v1584 = vrcp.pop %v1583
    %v1585 = vmul.f32 1.0, %v1584
    %v1587 = vrot.slane %v1504, 4
    %v1589 = vadd.f32 %v318, %v1587
    %v1590 = vxor.u32 %v1589, 2147483648
    %v1591 = vmul.f32 %v1590, 1.442695
    %v1592 = vpow.pop %v1591
    %v1593 = vadd.f32 %v1592, 1.0
    %v1594 = vrcp.pop %v1593
    %v1595 = vmul.f32 1.0, %v1594
    %v1596 = vadd.f32 %v1573, %v553
    %v1598 = vrot.slane %v1596, 4
    %v1600 = vmul.f32 %v1585, %v1598
    %v1601 = vadd.f32 %v392, %v1600
    %v1602 = vtanh.pop %v1601
    %v1603 = vsub.f32 1.0, %v1595
    %v1604 = vmul.f32 %v1603, %v1602
    %v1605 = vrot.slane %v1431, 6
    %v1607 = vmul.f32 %v1595, %v1605
    %v1608 = vadd.f32 %v1604, %v1607
    %v1610 = vrot.slane %v1608, 4
    %1612 = vmatprep.subr.mxu0 %v54
    %1613 = vmatpush1.msra.mxu0 %v53
    %1614 = vmatprep.subr.mxu0 %v57
    %1615 = vmatpush1.msra.mxu0 %v56
    %1616 = vmatprep.subr.mxu0 %v60
    %1617 = vmatpush1.msra.mxu0 %v59
    %1618 = vmatprep.subr.mxu0 %v63
    %1619 = vmatpush1.msra.mxu0 %v62
    %1620 = vmatprep.subr.mxu0 %v66
    %1621 = vmatpush1.msra.mxu0 %v65
    %1622 = vmatprep.subr.mxu0 %v69
    %1623 = vmatpush1.msra.mxu0 %v68
    %1624 = vmatprep.subr.mxu0 %v72
    %1625 = vmatpush1.msra.mxu0 %v71
    %1626 = vmatprep.subr.mxu0 %v75
    %1627 = vmatpush1.msra.mxu0 %v74
    %1628 = vmatprep.subr.mxu0 %v78
    %1629 = vmatpush1.msra.mxu0 %v77
    %1630 = vmatprep.subr.mxu0 %v81
    %1631 = vmatpush1.msra.mxu0 %v80
    %1632 = vmatprep.subr.mxu0 %v84
    %1633 = vmatpush1.msra.mxu0 %v83
    %1634 = vmatprep.subr.mxu0 %v87
    %1635 = vmatpush1.msra.mxu0 %v86
    %1636 = vmatprep.subr.mxu0 %v90
    %1637 = vmatpush1.msra.mxu0 %v89
    %1638 = vmatprep.subr.mxu0 %v93
    %1639 = vmatpush1.msra.mxu0 %v92
    %1640 = vmatprep.subr.mxu0 %v96
    %1641 = vmatpush1.msra.mxu0 %v95
    %1642 = vmatprep.subr.mxu0 %v99
    %1643 = vmatpush1.msra.mxu0 %v98
    %1644 = vmatprep.subr.mxu0 0.0
    %1645 = vmatpush1.msra.mxu0 0.0
    %1646 = vmatprep.subr.mxu0 0.0
    %1647 = vmatpush1.msra.mxu0 0.0
    %1648 = vmatprep.subr.mxu0 0.0
    %1649 = vmatpush1.msra.mxu0 0.0
    %1650 = vmatprep.subr.mxu0 0.0
    %1651 = vmatpush1.msra.mxu0 0.0
    %1652 = vmatprep.subr.mxu0 0.0
    %1653 = vmatpush1.msra.mxu0 0.0
    %1654 = vmatprep.subr.mxu0 0.0
    %1655 = vmatpush1.msra.mxu0 0.0
    %1656 = vmatprep.subr.mxu0 0.0
    %1657 = vmatpush1.msra.mxu0 0.0
    %1658 = vmatprep.subr.mxu0 0.0
    %1659 = vmatpush1.msra.mxu0 0.0
    %1660 = vmatprep.subr.mxu0 0.0
    %1661 = vmatpush1.msra.mxu0 0.0
    %1662 = vmatprep.subr.mxu0 0.0
    %1663 = vmatpush1.msra.mxu0 0.0
    %1664 = vmatprep.subr.mxu0 0.0
    %1665 = vmatpush1.msra.mxu0 0.0
    %1666 = vmatprep.subr.mxu0 0.0
    %1667 = vmatpush1.msra.mxu0 0.0
    %1668 = vmatprep.subr.mxu0 0.0
    %1669 = vmatpush1.msra.mxu0 0.0
    %1670 = vmatprep.subr.mxu0 0.0
    %1671 = vmatpush1.msra.mxu0 0.0
    %1672 = vmatprep.subr.mxu0 0.0
    %1673 = vmatpush1.msra.mxu0 0.0
    %1674 = vmatprep.subr.mxu0 0.0
    %1675 = vmatpush1.msra.mxu0 0.0
    %1676 = vmatprep.mubr.f32.mxu0 0.0
    %1677 = vmatmul.mubr.f32.gmra.mrb[0].mxu0 %v1610
    %v1678 = vpop.f32.mrb[0].mxu0
    %v1679 = vadd.f32 0.0, %v1678
    %v1680 = vpop.f32.mrb[0].mxu0
    %v1681 = vadd.f32 0.0, %v1680
    %1682 = vdwg.mxu0
    %1683 = vmatprep.subr.mxu0 0.0
    %1684 = vmatpush1.msra.mxu0 %v55
    %1685 = vmatprep.subr.mxu0 0.0
    %1686 = vmatpush1.msra.mxu0 %v58
    %1687 = vmatprep.subr.mxu0 0.0
    %1688 = vmatpush1.msra.mxu0 %v61
    %1689 = vmatprep.subr.mxu0 0.0
    %1690 = vmatpush1.msra.mxu0 %v64
    %1691 = vmatprep.subr.mxu0 0.0
    %1692 = vmatpush1.msra.mxu0 %v67
    %1693 = vmatprep.subr.mxu0 0.0
    %1694 = vmatpush1.msra.mxu0 %v70
    %1695 = vmatprep.subr.mxu0 0.0
    %1696 = vmatpush1.msra.mxu0 %v73
    %1697 = vmatprep.subr.mxu0 0.0
    %1698 = vmatpush1.msra.mxu0 %v76
    %1699 = vmatprep.subr.mxu0 0.0
    %1700 = vmatpush1.msra.mxu0 %v79
    %1701 = vmatprep.subr.mxu0 0.0
    %1702 = vmatpush1.msra.mxu0 %v82
    %1703 = vmatprep.subr.mxu0 0.0
    %1704 = vmatpush1.msra.mxu0 %v85
    %1705 = vmatprep.subr.mxu0 0.0
    %1706 = vmatpush1.msra.mxu0 %v88
    %1707 = vmatprep.subr.mxu0 0.0
    %1708 = vmatpush1.msra.mxu0 %v91
    %1709 = vmatprep.subr.mxu0 0.0
    %1710 = vmatpush1.msra.mxu0 %v94
    %1711 = vmatprep.subr.mxu0 0.0
    %1712 = vmatpush1.msra.mxu0 %v97
    %1713 = vmatprep.subr.mxu0 0.0
    %1714 = vmatpush1.msra.mxu0 %v100
    %1715 = vmatprep.subr.mxu0 0.0
    %1716 = vmatpush1.msra.mxu0 0.0
    %1717 = vmatprep.subr.mxu0 0.0
    %1718 = vmatpush1.msra.mxu0 0.0
    %1719 = vmatprep.subr.mxu0 0.0
    %1720 = vmatpush1.msra.mxu0 0.0
    %1721 = vmatprep.subr.mxu0 0.0
    %1722 = vmatpush1.msra.mxu0 0.0
    %1723 = vmatprep.subr.mxu0 0.0
    %1724 = vmatpush1.msra.mxu0 0.0
    %1725 = vmatprep.subr.mxu0 0.0
    %1726 = vmatpush1.msra.mxu0 0.0
    %1727 = vmatprep.subr.mxu0 0.0
    %1728 = vmatpush1.msra.mxu0 0.0
    %1729 = vmatprep.subr.mxu0 0.0
    %1730 = vmatpush1.msra.mxu0 0.0
    %1731 = vmatprep.subr.mxu0 0.0
    %1732 = vmatpush1.msra.mxu0 0.0
    %1733 = vmatprep.subr.mxu0 0.0
    %1734 = vmatpush1.msra.mxu0 0.0
    %1735 = vmatprep.subr.mxu0 0.0
    %1736 = vmatpush1.msra.mxu0 0.0
    %1737 = vmatprep.subr.mxu0 0.0
    %1738 = vmatpush1.msra.mxu0 0.0
    %1739 = vmatprep.subr.mxu0 0.0
    %1740 = vmatpush1.msra.mxu0 0.0
    %1741 = vmatprep.subr.mxu0 0.0
    %1742 = vmatpush1.msra.mxu0 0.0
    %1743 = vmatprep.subr.mxu0 0.0
    %1744 = vmatpush1.msra.mxu0 0.0
    %1745 = vmatprep.subr.mxu0 0.0
    %1746 = vmatpush1.msra.mxu0 0.0
    %1747 = vmatprep.mubr.f32.mxu0 0.0
    %1748 = vmatmul.mubr.f32.gmra.mrb[0].mxu0 %v1610
    %v1749 = vpop.f32.mrb[0].mxu0
    %v1750 = vadd.f32 0.0, %v1749
    %v1751 = vpop.f32.mrb[0].mxu0
    %1752 = vdwg.mxu0
    %v1754 = vrot.slane %v1679, 2
    %v1756 = vadd.f32 %v316, %v1754
    %v1757 = vxor.u32 %v1756, 2147483648
    %v1758 = vmul.f32 %v1757, 1.442695
    %v1759 = vpow.pop %v1758
    %v1760 = vadd.f32 %v1759, 1.0
    %v1761 = vrcp.pop %v1760
    %v1762 = vmul.f32 1.0, %v1761
    %v1764 = vrot.slane %v1681, 2
    %v1766 = vadd.f32 %v318, %v1764
    %v1767 = vxor.u32 %v1766, 2147483648
    %v1768 = vmul.f32 %v1767, 1.442695
    %v1769 = vpow.pop %v1768
    %v1770 = vadd.f32 %v1769, 1.0
    %v1771 = vrcp.pop %v1770
    %v1772 = vmul.f32 1.0, %v1771
    %v1773 = vadd.f32 %v1750, %v553
    %v1775 = vrot.slane %v1773, 2
    %v1777 = vmul.f32 %v1762, %v1775
    %v1778 = vadd.f32 %v392, %v1777
    %v1779 = vtanh.pop %v1778
    %v1780 = vsub.f32 1.0, %v1772
    %v1781 = vmul.f32 %v1780, %v1779
    %v1782 = vrot.slane %v1608, 6
    %v1784 = vmul.f32 %v1772, %v1782
    %v1785 = vadd.f32 %v1781, %v1784
    %v1786 = vmax.f32 %v215, 0.0
    %v1787 = vmax.f32 %v1785, 0.0
    %v1789 = vrot.slane %v1787, 6
    %1791 = vmatprep.subr.mxu0 0.0
    %1792 = vmatpush1.msra.mxu0 %v123
    %1793 = vmatprep.subr.mxu0 0.0
    %1794 = vmatpush1.msra.mxu0 %v124
    %1795 = vmatprep.subr.mxu0 0.0
    %1796 = vmatpush1.msra.mxu0 %v125
    %1797 = vmatprep.subr.mxu0 0.0
    %1798 = vmatpush1.msra.mxu0 %v126
    %1799 = vmatprep.subr.mxu0 0.0
    %1800 = vmatpush1.msra.mxu0 %v127
    %1801 = vmatprep.subr.mxu0 0.0
    %1802 = vmatpush1.msra.mxu0 %v128
    %1803 = vmatprep.subr.mxu0 0.0
    %1804 = vmatpush1.msra.mxu0 %v129
    %1805 = vmatprep.subr.mxu0 0.0
    %1806 = vmatpush1.msra.mxu0 %v130
    %1807 = vmatprep.subr.mxu0 0.0
    %1808 = vmatpush1.msra.mxu0 %v131
    %1809 = vmatprep.subr.mxu0 0.0
    %1810 = vmatpush1.msra.mxu0 %v132
    %1811 = vmatprep.subr.mxu0 0.0
    %1812 = vmatpush1.msra.mxu0 %v133
    %1813 = vmatprep.subr.mxu0 0.0
    %1814 = vmatpush1.msra.mxu0 %v134
    %1815 = vmatprep.subr.mxu0 0.0
    %1816 = vmatpush1.msra.mxu0 %v135
    %1817 = vmatprep.subr.mxu0 0.0
    %1818 = vmatpush1.msra.mxu0 %v136
    %1819 = vmatprep.subr.mxu0 0.0
    %1820 = vmatpush1.msra.mxu0 %v137
    %1821 = vmatprep.subr.mxu0 0.0
    %1822 = vmatpush1.msra.mxu0 %v138
    %1823 = vmatprep.subr.mxu0 0.0
    %1824 = vmatpush1.msra.mxu0 0.0
    %1825 = vmatprep.subr.mxu0 0.0
    %1826 = vmatpush1.msra.mxu0 0.0
    %1827 = vmatprep.subr.mxu0 0.0
    %1828 = vmatpush1.msra.mxu0 0.0
    %1829 = vmatprep.subr.mxu0 0.0
    %1830 = vmatpush1.msra.mxu0 0.0
    %1831 = vmatprep.subr.mxu0 0.0
    %1832 = vmatpush1.msra.mxu0 0.0
    %1833 = vmatprep.subr.mxu0 0.0
    %1834 = vmatpush1.msra.mxu0 0.0
    %1835 = vmatprep.subr.mxu0 0.0
    %1836 = vmatpush1.msra.mxu0 0.0
    %1837 = vmatprep.subr.mxu0 0.0
    %1838 = vmatpush1.msra.mxu0 0.0
    %1839 = vmatprep.subr.mxu0 0.0
    %1840 = vmatpush1.msra.mxu0 0.0
    %1841 = vmatprep.subr.mxu0 0.0
    %1842 = vmatpush1.msra.mxu0 0.0
    %1843 = vmatprep.subr.mxu0 0.0
    %1844 = vmatpush1.msra.mxu0 0.0
    %1845 = vmatprep.subr.mxu0 0.0
    %1846 = vmatpush1.msra.mxu0 0.0
    %1847 = vmatprep.subr.mxu0 0.0
    %1848 = vmatpush1.msra.mxu0 0.0
    %1849 = vmatprep.subr.mxu0 0.0
    %1850 = vmatpush1.msra.mxu0 0.0
    %1851 = vmatprep.subr.mxu0 0.0
    %1852 = vmatpush1.msra.mxu0 0.0
    %1853 = vmatprep.subr.mxu0 0.0
    %1854 = vmatpush1.msra.mxu0 0.0
    %1855 = vmatprep.mubr.f32.mxu0 0.0
    %1856 = vmatmul.mubr.f32.gmra.mrb[0].mxu0 %v1789
    %v1857 = vpop.f32.mrb[0].mxu0
    %v1858 = vadd.f32 0.0, %v1857
    %v1859 = vpop.f32.mrb[0].mxu0
    %1860 = vdwg.mxu0
    %1861 = vmatprep.subr.mxu0 0.0
    %1862 = vmatpush1.msra.mxu0 %v107
    %1863 = vmatprep.subr.mxu0 0.0
    %1864 = vmatpush1.msra.mxu0 %v108
    %1865 = vmatprep.subr.mxu0 0.0
    %1866 = vmatpush1.msra.mxu0 %v109
    %1867 = vmatprep.subr.mxu0 0.0
    %1868 = vmatpush1.msra.mxu0 %v110
    %1869 = vmatprep.subr.mxu0 0.0
    %1870 = vmatpush1.msra.mxu0 %v111
    %1871 = vmatprep.subr.mxu0 0.0
    %1872 = vmatpush1.msra.mxu0 %v112
    %1873 = vmatprep.subr.mxu0 0.0
    %1874 = vmatpush1.msra.mxu0 %v113
    %1875 = vmatprep.subr.mxu0 0.0
    %1876 = vmatpush1.msra.mxu0 %v114
    %1877 = vmatprep.subr.mxu0 0.0
    %1878 = vmatpush1.msra.mxu0 %v115
    %1879 = vmatprep.subr.mxu0 0.0
    %1880 = vmatpush1.msra.mxu0 %v116
    %1881 = vmatprep.subr.mxu0 0.0
    %1882 = vmatpush1.msra.mxu0 %v117
    %1883 = vmatprep.subr.mxu0 0.0
    %1884 = vmatpush1.msra.mxu0 %v118
    %1885 = vmatprep.subr.mxu0 0.0
    %1886 = vmatpush1.msra.mxu0 %v119
    %1887 = vmatprep.subr.mxu0 0.0
    %1888 = vmatpush1.msra.mxu0 %v120
    %1889 = vmatprep.subr.mxu0 0.0
    %1890 = vmatpush1.msra.mxu0 %v121
    %1891 = vmatprep.subr.mxu0 0.0
    %1892 = vmatpush1.msra.mxu0 %v122
    %1893 = vmatprep.subr.mxu0 0.0
    %1894 = vmatpush1.msra.mxu0 0.0
    %1895 = vmatprep.subr.mxu0 0.0
    %1896 = vmatpush1.msra.mxu0 0.0
    %1897 = vmatprep.subr.mxu0 0.0
    %1898 = vmatpush1.msra.mxu0 0.0
    %1899 = vmatprep.subr.mxu0 0.0
    %1900 = vmatpush1.msra.mxu0 0.0
    %1901 = vmatprep.subr.mxu0 0.0
    %1902 = vmatpush1.msra.mxu0 0.0
    %1903 = vmatprep.subr.mxu0 0.0
    %1904 = vmatpush1.msra.mxu0 0.0
    %1905 = vmatprep.subr.mxu0 0.0
    %1906 = vmatpush1.msra.mxu0 0.0
    %1907 = vmatprep.subr.mxu0 0.0
    %1908 = vmatpush1.msra.mxu0 0.0
    %1909 = vmatprep.subr.mxu0 0.0
    %1910 = vmatpush1.msra.mxu0 0.0
    %1911 = vmatprep.subr.mxu0 0.0
    %1912 = vmatpush1.msra.mxu0 0.0
    %1913 = vmatprep.subr.mxu0 0.0
    %1914 = vmatpush1.msra.mxu0 0.0
    %1915 = vmatprep.subr.mxu0 0.0
    %1916 = vmatpush1.msra.mxu0 0.0
    %1917 = vmatprep.subr.mxu0 0.0
    %1918 = vmatpush1.msra.mxu0 0.0
    %1919 = vmatprep.subr.mxu0 0.0
    %1920 = vmatpush1.msra.mxu0 0.0
    %1921 = vmatprep.subr.mxu0 0.0
    %1922 = vmatpush1.msra.mxu0 0.0
    %1923 = vmatprep.subr.mxu0 0.0
    %1924 = vmatpush1.msra.mxu0 0.0
    %1925 = vmatprep.mubr.f32.mxu0 0.0
    %1926 = vmatmul.mubr.f32.gmra.mrb[0].mxu0 %v1786
    %v1927 = vpop.f32.mrb[0].mxu0
    %v1928 = vadd.f32 %v1858, %v1927
    %v1929 = vpop.f32.mrb[0].mxu0
    %1930 = vdwg.mxu0
    %v1931 = vlaneseq
    %v1932 = vshrl.u32 %v1931, 7
    %v1933 = vsub.s32 0, %v1932
    %v1934 = vrot.slane %v106, %v1933
    %v1935 = vadd.f32 %v1928, %v1934
    %1936 = vst [vmem:[#allocation7] sm:$0x3] %v1935
    // Predicated region
    $region26: #{simplenet_forward.1} parent=1 // pred_check
      _
    $region27: #{simplenet_forward.1} parent=1 // pred_check_branch
      %1938 = sbr.rel (0) target = $region29
    $region28: #{simplenet_forward.1} parent=1 // pred_region
      %s1940 = ssub.s32 32, 32
      %1941 = vsyncadd [#allocation4], %s1940
      %s1943 = sshll.u32 [#allocation7], 4
      %s1944 = int_to_ptr.vmem [resolvable:$true] %s1943
      %1946 = dma.vmem_to_hbm [thread:$0]  %s1944, 32, %s4, [#allocation4]
    $region29: #{simplenet_forward.1} parent=1 // pred_fallthru
      _
    // Predicated region
    $region30: #{simplenet_forward.1} parent=1 // pred_check
      _
    $region31: #{simplenet_forward.1} parent=1 // pred_check_branch
      %1948 = sbr.rel (0) target = $region33
    $region32: #{simplenet_forward.1} parent=1 // pred_region
      %1949 = dma.done [#allocation4], 32
    $region33: #{simplenet_forward.1} parent=1 // pred_fallthru
      _
    %1950 = vsyncpa [#allocation3], 1
    %1951 = vsyncpa [#allocation6], 1
    %1952 = vsyncpa [#allocation4], 1

</llo_original>
